<compile_context>
chip_gen: v5e
topology: v5e:2x2
jax: 0.10.0
libtpu: 0.0.40
codegen_flags: <defaults>
</compile_context>

<pallas_src>
import functools

import jax
import jax.numpy as jnp
import numpy as np
from jax.experimental import pallas as pl
from jax.experimental.pallas import tpu as pltpu

# ----------------------------- synthetic config -----------------------------
VOCAB = 100
B = 2            # batch
S = 8            # sequence length (stands in for 512)
H = 32           # hidden size     (stands in for 768)
NUM_HEADS = 2
DH = H // NUM_HEADS
INTER = 64       # FFN intermediate size
NUM_LAYERS = 2
HEAD_FEATURES = [H, 16, 4]   # in_features -> hidden_features -> out_features
HEAD_PAD = 128               # lane-dense padding of the head matmul widths
LN_EPS_BERT = 1e-12
LN_EPS_HEAD = 1e-5
GELU_C = 0.7978845608028654  # sqrt(2/pi)


# ------------------------------- small helpers ------------------------------
def _ln_lastdim(x, g, b, eps):
    mu = jnp.mean(x, axis=-1, keepdims=True)
    var = jnp.mean((x - mu) ** 2, axis=-1, keepdims=True)
    return (x - mu) * jax.lax.rsqrt(var + eps) * g + b


def _gelu(x):
    # tanh-approximate GELU (EUP friendly)
    return 0.5 * x * (1.0 + jnp.tanh(GELU_C * (x + 0.044715 * x * x * x)))


# --------------------- Pallas: fused encoder + head kernel ------------------
def fused_bert_kernel(x_ref, mask_ref,
                      wqkv_ref, bqkv_ref, wo_ref, w1_ref, b1_ref, w2_ref,
                      vec_ref,
                      hln_ref, hw0_ref, hb0_ref, hw1_ref, hb1_ref,
                      out_ref, act_ref,
                      *, num_heads, num_layers, batch, s_len, h_dim):
    l = pl.program_id(0)                  # layer index (grid axis, "arbitrary")
    bf16, f32 = jnp.bfloat16, jnp.float32
    dh = h_dim // num_heads
    m_rows = batch * s_len                # B folded into matmul M

    # ---- step 0: stage the embedding output into the persistent VMEM carry ----
    @pl.when(l == 0)
    def _():
        act_ref[...] = x_ref[...]

    x3 = act_ref[...]                     # (B, S, H) f32, VMEM-resident across layers
    x2 = x3.reshape(m_rows, h_dim)        # (B*S, H)
    neg = (mask_ref[...] - 1.0) * 1e9     # (B, 1, S) additive key mask (kept in f32)

    # This grid step's (streamed, double-buffered) layer weights.
    wqkv = wqkv_ref[0]                    # (H, 3H) bf16  [q|k|v]; q pre-scaled
    bqkv = bqkv_ref[0]                    # (1, 3H) f32
    wo = wo_ref[0]                        # (H, H)   bf16
    w1 = w1_ref[0]                        # (H, INTER) bf16
    b1 = b1_ref[0]                        # (1, INTER) f32
    w2 = w2_ref[0]                        # (INTER, H) bf16
    vecs = vec_ref[0]                     # (6, H) f32: ln1g,ln1b,ln2g,ln2b,bo,b2

    # ---- fused QKV projection: ONE (B*S, H) @ (H, 3H) MXU matmul ----
    qkv = (jnp.dot(x2.astype(bf16), wqkv, preferred_element_type=f32)
           + bqkv).reshape(batch, s_len, 3 * h_dim)

    # Per-head slices off the 3H lane axis, stacked on a (heads*B) leading axis.
    def split_heads(lane_off):
        return jnp.concatenate(
            [qkv[:, :, lane_off + h * dh: lane_off + (h + 1) * dh]
             for h in range(num_heads)], axis=0).astype(bf16)     # (n*B, S, dh)

    q = split_heads(0)                    # 1/sqrt(dh) already folded in at pack time
    k = split_heads(h_dim)
    v = split_heads(2 * h_dim)
    negb = jnp.concatenate([neg] * num_heads, axis=0)             # (n*B, 1, S)

    s = jnp.einsum('bqd,bkd->bqk', q, k, preferred_element_type=f32) + negb
    s = s - jnp.max(s, axis=-1, keepdims=True)
    p = jnp.exp(s)
    p = p * pl.reciprocal(jnp.sum(p, axis=-1, keepdims=True), approx=True)
    ctx = jnp.einsum('bqk,bkd->bqd', p.astype(bf16), v,
                     preferred_element_type=f32)                  # (n*B, S, dh)

    # Lane-concat heads back to (B*S, H), then ONE (B*S,H) @ (H,H) output proj.
    ctx_f = jnp.concatenate(
        [ctx[h * batch:(h + 1) * batch] for h in range(num_heads)],
        axis=-1).reshape(m_rows, h_dim)
    attn = jnp.dot(ctx_f.astype(bf16), wo, preferred_element_type=f32) + vecs[4:5]
    h1 = _ln_lastdim(x2 + attn, vecs[0:1], vecs[1:2], LN_EPS_BERT)

    # ---- FFN (B folded into M) ----
    ff = _gelu(jnp.dot(h1.astype(bf16), w1, preferred_element_type=f32) + b1)
    ff = jnp.dot(ff.astype(bf16), w2, preferred_element_type=f32) + vecs[5:6]
    h2 = _ln_lastdim(h1 + ff, vecs[2:3], vecs[3:4], LN_EPS_BERT)

    act_ref[...] = h2.reshape(batch, s_len, h_dim)   # carry to next layer step

    # ---- regression head on the final layer step ----
    @pl.when(l == num_layers - 1)
    def _():
        hf = h2.reshape(batch, s_len, h_dim)
        # LayerNorm over the whole (S, H) slab, per batch element.
        inv_n = 1.0 / float(s_len * h_dim)
        mu = jnp.sum(jnp.sum(hf, axis=2, keepdims=True), axis=1,
                     keepdims=True) * inv_n
        d = hf - mu
        var = jnp.sum(jnp.sum(d * d, axis=2, keepdims=True), axis=1,
                      keepdims=True) * inv_n
        xn = d * jax.lax.rsqrt(var + LN_EPS_HEAD) * hln_ref[0] + hln_ref[1]

        # Linear -> ReLU (dropout = identity); widths padded to 128 lanes.
        xf = xn.reshape(m_rows, h_dim)
        z = jnp.maximum(jnp.dot(xf.astype(bf16), hw0_ref[...],
                                preferred_element_type=f32) + hb0_ref[...], 0.0)
        z = jnp.maximum(jnp.dot(z.astype(bf16), hw1_ref[...],
                                preferred_element_type=f32) + hb1_ref[...], 0.0)
        z = z.reshape(batch, s_len, HEAD_PAD)

        # log_softmax over the sequence axis (torch dim=1), then mean over it.
        m = jnp.max(z, axis=1, keepdims=True)
        zz = z - m
        lse = jnp.log(jnp.sum(jnp.exp(zz), axis=1, keepdims=True))
        out_ref[...] = jnp.mean(zz - lse, axis=1)                 # (B, HEAD_PAD)


def bert_reg_forward_pallas(x_emb, mask3, lp, hp):
    b_, s_, h_ = x_emb.shape
    n_layers = lp["wqkv"].shape[0]

    c3 = lambda l: (0, 0, 0)        # constant-index blocks (DMA'd once)
    c2 = lambda l: (0, 0)
    lw = lambda l: (l, 0, 0)        # per-layer streamed weight blocks

    in_specs = [
        pl.BlockSpec((b_, s_, h_), c3),                       # x_emb
        pl.BlockSpec((b_, 1, s_), c3),                        # mask
        pl.BlockSpec((1, h_, 3 * h_), lw),                    # wqkv
        pl.BlockSpec((1, 1, 3 * h_), lw),                     # bqkv
        pl.BlockSpec((1, h_, h_), lw),                        # wo
        pl.BlockSpec((1, h_, INTER), lw),                     # w1
        pl.BlockSpec((1, 1, INTER), lw),                      # b1
        pl.BlockSpec((1, INTER, h_), lw),                     # w2
        pl.BlockSpec((1, 6, h_), lw),                         # vec
        pl.BlockSpec((2, s_, h_), c3),                        # hln
        pl.BlockSpec((h_, HEAD_PAD), c2),                     # hw0
        pl.BlockSpec((1, HEAD_PAD), c2),                      # hb0
        pl.BlockSpec((HEAD_PAD, HEAD_PAD), c2),               # hw1
        pl.BlockSpec((1, HEAD_PAD), c2),                      # hb1
    ]

    out = pl.pallas_call(
        functools.partial(fused_bert_kernel,
                          num_heads=NUM_HEADS, num_layers=n_layers,
                          batch=b_, s_len=s_, h_dim=h_),
        out_shape=jax.ShapeDtypeStruct((b_, HEAD_PAD), jnp.float32),
        grid=(n_layers,),                                     # stream weights per layer
        in_specs=in_specs,
        out_specs=pl.BlockSpec((b_, HEAD_PAD), c2),
        scratch_shapes=[pltpu.VMEM((b_, s_, h_), jnp.float32)],   # activation carry
        compiler_params=pltpu.CompilerParams(
            dimension_semantics=("arbitrary",),               # sequential layer chain
            vmem_limit_bytes=48 * 1024 * 1024),
    )(x_emb, mask3, lp["wqkv"], lp["bqkv"], lp["wo"], lp["w1"], lp["b1"],
      lp["w2"], lp["vec"], hp["hln"], hp["hw0"], hp["hb0"], hp["hw1"], hp["hb1"])
    return out[:, :HEAD_FEATURES[-1]]                         # (B, OUT)


# ----------------------------- parameters / glue -----------------------------
def init_params(key):
    keys = iter(jax.random.split(key, 64))

    def nrm(shape, scale=0.02):
        w = scale * jax.random.normal(next(keys), shape)
        # Round-trip through bf16 so kernel (bf16) and reference (f32) use
        # numerically identical effective weights.
        return w.astype(jnp.bfloat16).astype(jnp.float32)

    params = {
        "word_emb": nrm((VOCAB, H)),
        "pos_emb": nrm((S, H)),
        "type_emb": nrm((1, H)),
        "emb_lng": jnp.ones((1, H), jnp.float32),
        "emb_lnb": jnp.zeros((1, H), jnp.float32),
        "layers": [],
    }
    for _ in range(NUM_LAYERS):
        params["layers"].append(dict(
            wq=nrm((H, H)), bq=nrm((1, H)),
            wk=nrm((H, H)), bk=nrm((1, H)),
            wv=nrm((H, H)), bv=nrm((1, H)),
            wo=nrm((H, H)), bo=nrm((1, H)),
            ln1g=jnp.ones((1, H), jnp.float32), ln1b=jnp.zeros((1, H), jnp.float32),
            w1=nrm((H, INTER)), b1=nrm((1, INTER)),
            w2=nrm((INTER, H)), b2=nrm((1, H)),
            ln2g=jnp.ones((1, H), jnp.float32), ln2b=jnp.zeros((1, H), jnp.float32),
        ))
    params["head"] = dict(
        lng=jnp.ones((S, H), jnp.float32), lnb=jnp.zeros((S, H), jnp.float32),
        w0=nrm((HEAD_FEATURES[0], HEAD_FEATURES[1]), 0.1),
        b0=nrm((1, HEAD_FEATURES[1]), 0.1),
        w1=nrm((HEAD_FEATURES[1], HEAD_FEATURES[2]), 0.1),
        b1=nrm((1, HEAD_FEATURES[2]), 0.1),
    )
    return params


def pack_layer_params(layers):
    """Stack per-layer weights on a leading 'layer' axis for grid streaming.
    QKV fused into one (H, 3H) weight; 1/sqrt(dh) folded into the q columns
    (exact here: 0.25 is a power of two); small (1,H) vectors packed into one
    (6, H) array; matmul weights stored bf16."""
    scale = 1.0 / float(np.sqrt(DH))
    wqkv_l, bqkv_l, wo_l, w1_l, b1_l, w2_l, vec_l = [], [], [], [], [], [], []
    for p in layers:
        wqkv_l.append(jnp.concatenate([p["wq"] * scale, p["wk"], p["wv"]], axis=1))
        bqkv_l.append(jnp.concatenate([p["bq"] * scale, p["bk"], p["bv"]], axis=1))
        wo_l.append(p["wo"])
        w1_l.append(p["w1"]); b1_l.append(p["b1"]); w2_l.append(p["w2"])
        vec_l.append(jnp.stack([p["ln1g"][0], p["ln1b"][0], p["ln2g"][0],
                                p["ln2b"][0], p["bo"][0], p["b2"][0]], axis=0))
    return dict(
        wqkv=jnp.stack(wqkv_l).astype(jnp.bfloat16),   # (L, H, 3H)
        bqkv=jnp.stack(bqkv_l).astype(jnp.float32),    # (L, 1, 3H)
        wo=jnp.stack(wo_l).astype(jnp.bfloat16),       # (L, H, H)
        w1=jnp.stack(w1_l).astype(jnp.bfloat16),       # (L, H, INTER)
        b1=jnp.stack(b1_l).astype(jnp.float32),        # (L, 1, INTER)
        w2=jnp.stack(w2_l).astype(jnp.bfloat16),       # (L, INTER, H)
        vec=jnp.stack(vec_l).astype(jnp.float32),      # (L, 6, H)
    )


def pack_head_params(p):
    """Zero-pad head matmul widths to 128 lanes (lane-dense stores); bf16 weights."""
    f1, f2 = HEAD_FEATURES[1], HEAD_FEATURES[2]
    hw0 = jnp.zeros((H, HEAD_PAD), jnp.float32).at[:, :f1].set(p["w0"])
    hb0 = jnp.zeros((1, HEAD_PAD), jnp.float32).at[:, :f1].set(p["b0"])
    hw1 = jnp.zeros((HEAD_PAD, HEAD_PAD), jnp.float32).at[:f1, :f2].set(p["w1"])
    hb1 = jnp.zeros((1, HEAD_PAD), jnp.float32).at[:, :f2].set(p["b1"])
    return dict(hln=jnp.stack([p["lng"], p["lnb"]], axis=0),   # (2, S, H)
                hw0=hw0.astype(jnp.bfloat16), hb0=hb0,
                hw1=hw1.astype(jnp.bfloat16), hb1=hb1)


def embed(token_ids, p):
    # glue: embedding gather + embedding LayerNorm (last dim)
    emb = (p["word_emb"][token_ids]
           + p["pos_emb"][None, :, :]
           + p["type_emb"][0][None, None, :])
    return _ln_lastdim(emb, p["emb_lng"], p["emb_lnb"], LN_EPS_BERT)


# ------------------------------ pure-JAX reference ---------------------------
def ref_encoder_layer(x, mask, p):
    b_, s_, h_ = x.shape
    q = x @ p["wq"] + p["bq"]
    k = x @ p["wk"] + p["bk"]
    v = x @ p["wv"] + p["bv"]
    split = lambda t: t.reshape(b_, s_, NUM_HEADS, DH)
    qh, kh, vh = split(q), split(k), split(v)
    scores = jnp.einsum("bqnd,bknd->bnqk", qh, kh) / np.sqrt(DH)
    scores = scores + (mask[:, None, None, :] - 1.0) * 1e9
    pattn = jax.nn.softmax(scores, axis=-1)
    ctx = jnp.einsum("bnqk,bknd->bqnd", pattn, vh).reshape(b_, s_, h_)
    attn = ctx @ p["wo"] + p["bo"]
    h1 = _ln_lastdim(x + attn, p["ln1g"], p["ln1b"], LN_EPS_BERT)
    ff = _gelu(h1 @ p["w1"] + p["b1"]) @ p["w2"] + p["b2"]
    return _ln_lastdim(h1 + ff, p["ln2g"], p["ln2b"], LN_EPS_BERT)


def ref_head(h, p):
    mu = jnp.mean(h, axis=(1, 2), keepdims=True)
    var = jnp.mean((h - mu) ** 2, axis=(1, 2), keepdims=True)
    x = (h - mu) / jnp.sqrt(var + LN_EPS_HEAD) * p["lng"] + p["lnb"]
    x = jnp.maximum(x @ p["w0"] + p["b0"], 0.0)
    x = jnp.maximum(x @ p["w1"] + p["b1"], 0.0)
    x = jax.nn.log_softmax(x, axis=1)
    return jnp.mean(x, axis=1)


# ----------------------------------- main ------------------------------------
if __name__ == "__main__":
    key = jax.random.PRNGKey(0)
    pkey, dkey = jax.random.split(key)
    params = init_params(pkey)

    token_ids = jax.random.randint(dkey, (B, S), 0, VOCAB, dtype=jnp.int32)
    attention_mask = jnp.ones((B, S), jnp.float32).at[1, 6:].set(0.0)
    mask3 = attention_mask[:, None, :]               # (B, 1, S) for the kernel

    layer_pack = pack_layer_params(params["layers"])
    head_pack = pack_head_params(params["head"])

    # --- Pallas forward pass (single fused kernel after the embedding glue) ---
    h_emb = embed(token_ids, params)
    out = bert_reg_forward_pallas(h_emb, mask3, layer_pack, head_pack)
    out = jax.block_until_ready(out)

    # --- pure-JAX reference for a sanity check ---
    with jax.default_matmul_precision("highest"):
        h_ref = embed(token_ids, params)
        for lp_ in params["layers"]:
            h_ref = ref_encoder_layer(h_ref, attention_mask, lp_)
        out_ref = ref_head(h_ref, params["head"])

    np.testing.assert_allclose(np.asarray(out), np.asarray(out_ref),
                               atol=5e-2, rtol=5e-2)
    print("KERNEL_OK")
</pallas_src>

<mosaic_0001>
module attributes {stable_mosaic.version = 11 : i64} {
  func.func @fused_bert_kernel(%arg0: i32, %arg1: memref<2x8x32xf32, #tpu.memory_space<vmem>>, %arg2: memref<2x1x8xf32, #tpu.memory_space<vmem>>, %arg3: memref<1x32x96xbf16, #tpu.memory_space<vmem>>, %arg4: memref<1x1x96xf32, #tpu.memory_space<vmem>>, %arg5: memref<1x32x32xbf16, #tpu.memory_space<vmem>>, %arg6: memref<1x32x64xbf16, #tpu.memory_space<vmem>>, %arg7: memref<1x1x64xf32, #tpu.memory_space<vmem>>, %arg8: memref<1x64x32xbf16, #tpu.memory_space<vmem>>, %arg9: memref<1x6x32xf32, #tpu.memory_space<vmem>>, %arg10: memref<2x8x32xf32, #tpu.memory_space<vmem>>, %arg11: memref<32x128xbf16, #tpu.memory_space<vmem>>, %arg12: memref<1x128xf32, #tpu.memory_space<vmem>>, %arg13: memref<128x128xbf16, #tpu.memory_space<vmem>>, %arg14: memref<1x128xf32, #tpu.memory_space<vmem>>, %arg15: memref<2x128xf32, #tpu.memory_space<vmem>>, %arg16: memref<2x8x32xf32, #tpu.memory_space<vmem>>) attributes {dimension_semantics = [#tpu.dimension_semantics<arbitrary>], iteration_bounds = array<i64: 2>, scalar_prefetch = 0 : i64, scratch_operands = 1 : i64, tpu.core_type = #tpu.core_type<tc>, window_params = [{pipeline_mode = #tpu.pipeline_mode<synchronous>, transform_indices = @transform_0, window_bounds = array<i64: 2, 8, 32>}, {pipeline_mode = #tpu.pipeline_mode<synchronous>, transform_indices = @transform_1, window_bounds = array<i64: 2, 1, 8>}, {transform_indices = @transform_2, window_bounds = array<i64: 1, 32, 96>}, {transform_indices = @transform_3, window_bounds = array<i64: 1, 1, 96>}, {transform_indices = @transform_4, window_bounds = array<i64: 1, 32, 32>}, {transform_indices = @transform_5, window_bounds = array<i64: 1, 32, 64>}, {transform_indices = @transform_6, window_bounds = array<i64: 1, 1, 64>}, {transform_indices = @transform_7, window_bounds = array<i64: 1, 64, 32>}, {transform_indices = @transform_8, window_bounds = array<i64: 1, 6, 32>}, {pipeline_mode = #tpu.pipeline_mode<synchronous>, transform_indices = @transform_9, window_bounds = array<i64: 2, 8, 32>}, {pipeline_mode = #tpu.pipeline_mode<synchronous>, transform_indices = @transform_10, window_bounds = array<i64: 32, 128>}, {pipeline_mode = #tpu.pipeline_mode<synchronous>, transform_indices = @transform_11, window_bounds = array<i64: 1, 128>}, {pipeline_mode = #tpu.pipeline_mode<synchronous>, transform_indices = @transform_12, window_bounds = array<i64: 128, 128>}, {pipeline_mode = #tpu.pipeline_mode<synchronous>, transform_indices = @transform_13, window_bounds = array<i64: 1, 128>}, {pipeline_mode = #tpu.pipeline_mode<synchronous>, transform_indices = @transform_14, window_bounds = array<i64: 2, 128>}]} {
    %c0_i32 = arith.constant 0 : i32
    %0 = arith.cmpi eq, %arg0, %c0_i32 : i32
    %1 = arith.extui %0 : i1 to i32
    %c0_i32_0 = arith.constant 0 : i32
    %2 = arith.cmpi ne, %1, %c0_i32_0 : i32
    scf.if %2 {
      %c0_54 = arith.constant 0 : index
      %c0_55 = arith.constant 0 : index
      %c0_56 = arith.constant 0 : index
      %143 = vector.load %arg1[%c0_54, %c0_55, %c0_56] : memref<2x8x32xf32, #tpu.memory_space<vmem>>, vector<2x8x32xf32>
      %c0_57 = arith.constant 0 : index
      %c0_58 = arith.constant 0 : index
      %c0_59 = arith.constant 0 : index
      %144 = vector.load %arg16[%c0_57, %c0_58, %c0_59] : memref<2x8x32xf32, #tpu.memory_space<vmem>>, vector<2x8x32xf32>
      tpu.vector_store %arg16[%c0_57, %c0_58, %c0_59], %143 {strides = array<i32>} : memref<2x8x32xf32, #tpu.memory_space<vmem>>, vector<2x8x32xf32>,
    } else {
    }
    %c0 = arith.constant 0 : index
    %c0_1 = arith.constant 0 : index
    %c0_2 = arith.constant 0 : index
    %3 = vector.load %arg16[%c0, %c0_1, %c0_2] : memref<2x8x32xf32, #tpu.memory_space<vmem>>, vector<2x8x32xf32>
    %4 = vector.shape_cast %3 : vector<2x8x32xf32> to vector<16x32xf32>
    %c0_3 = arith.constant 0 : index
    %c0_4 = arith.constant 0 : index
    %c0_5 = arith.constant 0 : index
    %5 = vector.load %arg2[%c0_3, %c0_4, %c0_5] : memref<2x1x8xf32, #tpu.memory_space<vmem>>, vector<2x1x8xf32>
    %cst = arith.constant 1.000000e+00 : f32
    %6 = vector.broadcast %cst : f32 to vector<2x1x8xf32>
    %7 = arith.subf %5, %6 : vector<2x1x8xf32>
    %cst_6 = arith.constant 1.000000e+09 : f32
    %8 = vector.broadcast %cst_6 : f32 to vector<2x1x8xf32>
    %9 = arith.mulf %7, %8 : vector<2x1x8xf32>
    %c0_7 = arith.constant 0 : index
    %c0_8 = arith.constant 0 : index
    %c0_9 = arith.constant 0 : index
    %10 = vector.load %arg3[%c0_7, %c0_8, %c0_9] : memref<1x32x96xbf16, #tpu.memory_space<vmem>>, vector<1x32x96xbf16>
    %11 = vector.shape_cast %10 : vector<1x32x96xbf16> to vector<32x96xbf16>
    %c0_10 = arith.constant 0 : index
    %c0_11 = arith.constant 0 : index
    %c0_12 = arith.constant 0 : index
    %12 = vector.load %arg4[%c0_10, %c0_11, %c0_12] : memref<1x1x96xf32, #tpu.memory_space<vmem>>, vector<1x1x96xf32>
    %13 = vector.shape_cast %12 : vector<1x1x96xf32> to vector<1x96xf32>
    %c0_13 = arith.constant 0 : index
    %c0_14 = arith.constant 0 : index
    %c0_15 = arith.constant 0 : index
    %14 = vector.load %arg5[%c0_13, %c0_14, %c0_15] : memref<1x32x32xbf16, #tpu.memory_space<vmem>>, vector<1x32x32xbf16>
    %15 = vector.shape_cast %14 : vector<1x32x32xbf16> to vector<32x32xbf16>
    %c0_16 = arith.constant 0 : index
    %c0_17 = arith.constant 0 : index
    %c0_18 = arith.constant 0 : index
    %16 = vector.load %arg6[%c0_16, %c0_17, %c0_18] : memref<1x32x64xbf16, #tpu.memory_space<vmem>>, vector<1x32x64xbf16>
    %17 = vector.shape_cast %16 : vector<1x32x64xbf16> to vector<32x64xbf16>
    %c0_19 = arith.constant 0 : index
    %c0_20 = arith.constant 0 : index
    %c0_21 = arith.constant 0 : index
    %18 = vector.load %arg7[%c0_19, %c0_20, %c0_21] : memref<1x1x64xf32, #tpu.memory_space<vmem>>, vector<1x1x64xf32>
    %19 = vector.shape_cast %18 : vector<1x1x64xf32> to vector<1x64xf32>
    %c0_22 = arith.constant 0 : index
    %c0_23 = arith.constant 0 : index
    %c0_24 = arith.constant 0 : index
    %20 = vector.load %arg8[%c0_22, %c0_23, %c0_24] : memref<1x64x32xbf16, #tpu.memory_space<vmem>>, vector<1x64x32xbf16>
    %21 = vector.shape_cast %20 : vector<1x64x32xbf16> to vector<64x32xbf16>
    %c0_25 = arith.constant 0 : index
    %c0_26 = arith.constant 0 : index
    %c0_27 = arith.constant 0 : index
    %22 = vector.load %arg9[%c0_25, %c0_26, %c0_27] : memref<1x6x32xf32, #tpu.memory_space<vmem>>, vector<1x6x32xf32>
    %23 = vector.shape_cast %22 : vector<1x6x32xf32> to vector<6x32xf32>
    %24 = arith.truncf %4 : vector<16x32xf32> to vector<16x32xbf16>
    %cst_28 = arith.constant dense<0.000000e+00> : vector<16x96xf32>
    %25 = tpu.matmul %24, %11, %cst_28 {dimension_numbers = #tpu.dot_dimension_numbers<[1], [0], [0], [1], [0, 0, 1, 1], [], []>} : vector<16x32xbf16>, vector<32x96xbf16>, vector<16x96xf32> -> vector<16x96xf32>
    %26 = vector.broadcast %13 : vector<1x96xf32> to vector<16x96xf32>
    %27 = arith.addf %25, %26 : vector<16x96xf32>
    %28 = vector.shape_cast %27 : vector<16x96xf32> to vector<2x8x96xf32>
    %29 = vector.extract_strided_slice %28 {offsets = [0, 0, 0], sizes = [2, 8, 16], strides = [1, 1, 1]} : vector<2x8x96xf32> to vector<2x8x16xf32>
    %30 = vector.extract_strided_slice %28 {offsets = [0, 0, 16], sizes = [2, 8, 16], strides = [1, 1, 1]} : vector<2x8x96xf32> to vector<2x8x16xf32>
    %31 = tpu.concatenate %29, %30 in 0 : vector<2x8x16xf32>, vector<2x8x16xf32> -> vector<4x8x16xf32>
    %32 = arith.truncf %31 : vector<4x8x16xf32> to vector<4x8x16xbf16>
    %33 = vector.extract_strided_slice %28 {offsets = [0, 0, 32], sizes = [2, 8, 16], strides = [1, 1, 1]} : vector<2x8x96xf32> to vector<2x8x16xf32>
    %34 = vector.extract_strided_slice %28 {offsets = [0, 0, 48], sizes = [2, 8, 16], strides = [1, 1, 1]} : vector<2x8x96xf32> to vector<2x8x16xf32>
    %35 = tpu.concatenate %33, %34 in 0 : vector<2x8x16xf32>, vector<2x8x16xf32> -> vector<4x8x16xf32>
    %36 = arith.truncf %35 : vector<4x8x16xf32> to vector<4x8x16xbf16>
    %37 = vector.extract_strided_slice %28 {offsets = [0, 0, 64], sizes = [2, 8, 16], strides = [1, 1, 1]} : vector<2x8x96xf32> to vector<2x8x16xf32>
    %38 = vector.extract_strided_slice %28 {offsets = [0, 0, 80], sizes = [2, 8, 16], strides = [1, 1, 1]} : vector<2x8x96xf32> to vector<2x8x16xf32>
    %39 = tpu.concatenate %37, %38 in 0 : vector<2x8x16xf32>, vector<2x8x16xf32> -> vector<4x8x16xf32>
    %40 = arith.truncf %39 : vector<4x8x16xf32> to vector<4x8x16xbf16>
    %41 = tpu.concatenate %9, %9 in 0 : vector<2x1x8xf32>, vector<2x1x8xf32> -> vector<4x1x8xf32>
    "tpu.trace_start"() <{level = 10 : i32, message = "bqd,bkd->bqk"}> : () -> ()
    %cst_29 = arith.constant dense<0.000000e+00> : vector<4x8x8xf32>
    %42 = tpu.matmul %32, %36, %cst_29 {dimension_numbers = #tpu.dot_dimension_numbers<[2], [2], [1], [1], [0, 0, 0, 1, 1, 1], [0], [0]>} : vector<4x8x16xbf16>, vector<4x8x16xbf16>, vector<4x8x8xf32> -> vector<4x8x8xf32>
    "tpu.trace_stop"() : () -> ()
    %43 = vector.broadcast %41 : vector<4x1x8xf32> to vector<4x8x8xf32>
    %44 = arith.addf %42, %43 : vector<4x8x8xf32>
    %cst_30 = arith.constant dense<0xFF800000> : vector<4x8xf32>
    %45 = vector.multi_reduction <maximumf>, %44, %cst_30 [2] : vector<4x8x8xf32> to vector<4x8xf32>
    %46 = vector.shape_cast %45 : vector<4x8xf32> to vector<4x8x1xf32>
    %47 = vector.broadcast %46 : vector<4x8x1xf32> to vector<4x8x8xf32>
    %48 = arith.subf %44, %47 : vector<4x8x8xf32>
    %49 = math.exp %48 : vector<4x8x8xf32>
    %cst_31 = arith.constant dense<0.000000e+00> : vector<4x8xf32>
    %50 = vector.multi_reduction <add>, %49, %cst_31 [2] : vector<4x8x8xf32> to vector<4x8xf32>
    %51 = vector.shape_cast %50 : vector<4x8xf32> to vector<4x8x1xf32>
    %52 = tpu.reciprocal %51 {approx = true} : vector<4x8x1xf32> -> vector<4x8x1xf32>
    %53 = vector.broadcast %52 : vector<4x8x1xf32> to vector<4x8x8xf32>
    %54 = arith.mulf %49, %53 : vector<4x8x8xf32>
    %55 = arith.truncf %54 : vector<4x8x8xf32> to vector<4x8x8xbf16>
    "tpu.trace_start"() <{level = 10 : i32, message = "bqk,bkd->bqd"}> : () -> ()
    %cst_32 = arith.constant dense<0.000000e+00> : vector<4x8x16xf32>
    %56 = tpu.matmul %55, %40, %cst_32 {dimension_numbers = #tpu.dot_dimension_numbers<[2], [1], [1], [2], [0, 0, 0, 1, 1, 2], [0], [0]>} : vector<4x8x8xbf16>, vector<4x8x16xbf16>, vector<4x8x16xf32> -> vector<4x8x16xf32>
    "tpu.trace_stop"() : () -> ()
    %57 = vector.extract_strided_slice %56 {offsets = [0, 0, 0], sizes = [2, 8, 16], strides = [1, 1, 1]} : vector<4x8x16xf32> to vector<2x8x16xf32>
    %58 = vector.extract_strided_slice %56 {offsets = [2, 0, 0], sizes = [2, 8, 16], strides = [1, 1, 1]} : vector<4x8x16xf32> to vector<2x8x16xf32>
    %59 = tpu.concatenate %57, %58 in 2 : vector<2x8x16xf32>, vector<2x8x16xf32> -> vector<2x8x32xf32>
    %60 = vector.shape_cast %59 : vector<2x8x32xf32> to vector<16x32xf32>
    %61 = arith.truncf %60 : vector<16x32xf32> to vector<16x32xbf16>
    %cst_33 = arith.constant dense<0.000000e+00> : vector<16x32xf32>
    %62 = tpu.matmul %61, %15, %cst_33 {dimension_numbers = #tpu.dot_dimension_numbers<[1], [0], [0], [1], [0, 0, 1, 1], [], []>} : vector<16x32xbf16>, vector<32x32xbf16>, vector<16x32xf32> -> vector<16x32xf32>
    %63 = vector.extract_strided_slice %23 {offsets = [4, 0], sizes = [1, 32], strides = [1, 1]} : vector<6x32xf32> to vector<1x32xf32>
    %64 = vector.broadcast %63 : vector<1x32xf32> to vector<16x32xf32>
    %65 = arith.addf %62, %64 : vector<16x32xf32>
    %66 = arith.addf %4, %65 : vector<16x32xf32>
    %67 = vector.extract_strided_slice %23 {offsets = [0, 0], sizes = [1, 32], strides = [1, 1]} : vector<6x32xf32> to vector<1x32xf32>
    %68 = vector.extract_strided_slice %23 {offsets = [1, 0], sizes = [1, 32], strides = [1, 1]} : vector<6x32xf32> to vector<1x32xf32>
    %cst_34 = arith.constant dense<0.000000e+00> : vector<16xf32>
    %69 = vector.multi_reduction <add>, %66, %cst_34 [1] : vector<16x32xf32> to vector<16xf32>
    %70 = vector.shape_cast %69 : vector<16xf32> to vector<16x1xf32>
    %cst_35 = arith.constant 3.200000e+01 : f32
    %71 = vector.broadcast %cst_35 : f32 to vector<16x1xf32>
    %72 = arith.divf %70, %71 : vector<16x1xf32>
    %73 = vector.broadcast %72 : vector<16x1xf32> to vector<16x32xf32>
    %74 = arith.subf %66, %73 : vector<16x32xf32>
    %75 = arith.mulf %74, %74 : vector<16x32xf32>
    %cst_36 = arith.constant dense<0.000000e+00> : vector<16xf32>
    %76 = vector.multi_reduction <add>, %75, %cst_36 [1] : vector<16x32xf32> to vector<16xf32>
    %77 = vector.shape_cast %76 : vector<16xf32> to vector<16x1xf32>
    %cst_37 = arith.constant 3.200000e+01 : f32
    %78 = vector.broadcast %cst_37 : f32 to vector<16x1xf32>
    %79 = arith.divf %77, %78 : vector<16x1xf32>
    %80 = vector.broadcast %72 : vector<16x1xf32> to vector<16x32xf32>
    %81 = arith.subf %66, %80 : vector<16x32xf32>
    %cst_38 = arith.constant 9.99999996E-13 : f32
    %82 = vector.broadcast %cst_38 : f32 to vector<16x1xf32>
    %83 = arith.addf %79, %82 : vector<16x1xf32>
    %84 = math.rsqrt %83 : vector<16x1xf32>
    %85 = vector.broadcast %84 : vector<16x1xf32> to vector<16x32xf32>
    %86 = arith.mulf %81, %85 : vector<16x32xf32>
    %87 = vector.broadcast %67 : vector<1x32xf32> to vector<16x32xf32>
    %88 = arith.mulf %86, %87 : vector<16x32xf32>
    %89 = vector.broadcast %68 : vector<1x32xf32> to vector<16x32xf32>
    %90 = arith.addf %88, %89 : vector<16x32xf32>
    %91 = arith.truncf %90 : vector<16x32xf32> to vector<16x32xbf16>
    %cst_39 = arith.constant dense<0.000000e+00> : vector<16x64xf32>
    %92 = tpu.matmul %91, %17, %cst_39 {dimension_numbers = #tpu.dot_dimension_numbers<[1], [0], [0], [1], [0, 0, 1, 1], [], []>} : vector<16x32xbf16>, vector<32x64xbf16>, vector<16x64xf32> -> vector<16x64xf32>
    %93 = vector.broadcast %19 : vector<1x64xf32> to vector<16x64xf32>
    %94 = arith.addf %92, %93 : vector<16x64xf32>
    %cst_40 = arith.constant 5.000000e-01 : f32
    %95 = vector.broadcast %cst_40 : f32 to vector<16x64xf32>
    %96 = arith.mulf %95, %94 : vector<16x64xf32>
    %cst_41 = arith.constant 4.471500e-02 : f32
    %97 = vector.broadcast %cst_41 : f32 to vector<16x64xf32>
    %98 = arith.mulf %97, %94 : vector<16x64xf32>
    %99 = arith.mulf %98, %94 : vector<16x64xf32>
    %100 = arith.mulf %99, %94 : vector<16x64xf32>
    %101 = arith.addf %94, %100 : vector<16x64xf32>
    %cst_42 = arith.constant 0.797884583 : f32
    %102 = vector.broadcast %cst_42 : f32 to vector<16x64xf32>
    %103 = arith.mulf %102, %101 : vector<16x64xf32>
    %104 = math.tanh %103 : vector<16x64xf32>
    %cst_43 = arith.constant 1.000000e+00 : f32
    %105 = vector.broadcast %cst_43 : f32 to vector<16x64xf32>
    %106 = arith.addf %105, %104 : vector<16x64xf32>
    %107 = arith.mulf %96, %106 : vector<16x64xf32>
    %108 = arith.truncf %107 : vector<16x64xf32> to vector<16x64xbf16>
    %cst_44 = arith.constant dense<0.000000e+00> : vector<16x32xf32>
    %109 = tpu.matmul %108, %21, %cst_44 {dimension_numbers = #tpu.dot_dimension_numbers<[1], [0], [0], [1], [0, 0, 1, 1], [], []>} : vector<16x64xbf16>, vector<64x32xbf16>, vector<16x32xf32> -> vector<16x32xf32>
    %110 = vector.extract_strided_slice %23 {offsets = [5, 0], sizes = [1, 32], strides = [1, 1]} : vector<6x32xf32> to vector<1x32xf32>
    %111 = vector.broadcast %110 : vector<1x32xf32> to vector<16x32xf32>
    %112 = arith.addf %109, %111 : vector<16x32xf32>
    %113 = arith.addf %90, %112 : vector<16x32xf32>
    %114 = vector.extract_strided_slice %23 {offsets = [2, 0], sizes = [1, 32], strides = [1, 1]} : vector<6x32xf32> to vector<1x32xf32>
    %115 = vector.extract_strided_slice %23 {offsets = [3, 0], sizes = [1, 32], strides = [1, 1]} : vector<6x32xf32> to vector<1x32xf32>
    %cst_45 = arith.constant dense<0.000000e+00> : vector<16xf32>
    %116 = vector.multi_reduction <add>, %113, %cst_45 [1] : vector<16x32xf32> to vector<16xf32>
    %117 = vector.shape_cast %116 : vector<16xf32> to vector<16x1xf32>
    %cst_46 = arith.constant 3.200000e+01 : f32
    %118 = vector.broadcast %cst_46 : f32 to vector<16x1xf32>
    %119 = arith.divf %117, %118 : vector<16x1xf32>
    %120 = vector.broadcast %119 : vector<16x1xf32> to vector<16x32xf32>
    %121 = arith.subf %113, %120 : vector<16x32xf32>
    %122 = arith.mulf %121, %121 : vector<16x32xf32>
    %cst_47 = arith.constant dense<0.000000e+00> : vector<16xf32>
    %123 = vector.multi_reduction <add>, %122, %cst_47 [1] : vector<16x32xf32> to vector<16xf32>
    %124 = vector.shape_cast %123 : vector<16xf32> to vector<16x1xf32>
    %cst_48 = arith.constant 3.200000e+01 : f32
    %125 = vector.broadcast %cst_48 : f32 to vector<16x1xf32>
    %126 = arith.divf %124, %125 : vector<16x1xf32>
    %127 = vector.broadcast %119 : vector<16x1xf32> to vector<16x32xf32>
    %128 = arith.subf %113, %127 : vector<16x32xf32>
    %cst_49 = arith.constant 9.99999996E-13 : f32
    %129 = vector.broadcast %cst_49 : f32 to vector<16x1xf32>
    %130 = arith.addf %126, %129 : vector<16x1xf32>
    %131 = math.rsqrt %130 : vector<16x1xf32>
    %132 = vector.broadcast %131 : vector<16x1xf32> to vector<16x32xf32>
    %133 = arith.mulf %128, %132 : vector<16x32xf32>
    %134 = vector.broadcast %114 : vector<1x32xf32> to vector<16x32xf32>
    %135 = arith.mulf %133, %134 : vector<16x32xf32>
    %136 = vector.broadcast %115 : vector<1x32xf32> to vector<16x32xf32>
    %137 = arith.addf %135, %136 : vector<16x32xf32>
    %138 = vector.shape_cast %137 : vector<16x32xf32> to vector<2x8x32xf32>
    %c0_50 = arith.constant 0 : index
    %c0_51 = arith.constant 0 : index
    %c0_52 = arith.constant 0 : index
    %139 = vector.load %arg16[%c0_50, %c0_51, %c0_52] : memref<2x8x32xf32, #tpu.memory_space<vmem>>, vector<2x8x32xf32>
    tpu.vector_store %arg16[%c0_50, %c0_51, %c0_52], %138 {strides = array<i32>} : memref<2x8x32xf32, #tpu.memory_space<vmem>>, vector<2x8x32xf32>,
    %c1_i32 = arith.constant 1 : i32
    %140 = arith.cmpi eq, %arg0, %c1_i32 : i32
    %141 = arith.extui %140 : i1 to i32
    %c0_i32_53 = arith.constant 0 : i32
    %142 = arith.cmpi ne, %141, %c0_i32_53 : i32
    scf.if %142 {
      %143 = vector.shape_cast %137 : vector<16x32xf32> to vector<2x8x32xf32>
      %cst_54 = arith.constant dense<0.000000e+00> : vector<2x8xf32>
      %144 = vector.multi_reduction <add>, %143, %cst_54 [2] : vector<2x8x32xf32> to vector<2x8xf32>
      %145 = vector.shape_cast %144 : vector<2x8xf32> to vector<2x8x1xf32>
      %cst_55 = arith.constant dense<0.000000e+00> : vector<2x1xf32>
      %146 = vector.multi_reduction <add>, %145, %cst_55 [1] : vector<2x8x1xf32> to vector<2x1xf32>
      %147 = vector.shape_cast %146 : vector<2x1xf32> to vector<2x1x1xf32>
      %cst_56 = arith.constant 3.906250e-03 : f32
      %148 = vector.broadcast %cst_56 : f32 to vector<2x1x1xf32>
      %149 = arith.mulf %147, %148 : vector<2x1x1xf32>
      %150 = vector.broadcast %149 : vector<2x1x1xf32> to vector<2x8x32xf32>
      %151 = arith.subf %143, %150 : vector<2x8x32xf32>
      %152 = arith.mulf %151, %151 : vector<2x8x32xf32>
      %cst_57 = arith.constant dense<0.000000e+00> : vector<2x8xf32>
      %153 = vector.multi_reduction <add>, %152, %cst_57 [2] : vector<2x8x32xf32> to vector<2x8xf32>
      %154 = vector.shape_cast %153 : vector<2x8xf32> to vector<2x8x1xf32>
      %cst_58 = arith.constant dense<0.000000e+00> : vector<2x1xf32>
      %155 = vector.multi_reduction <add>, %154, %cst_58 [1] : vector<2x8x1xf32> to vector<2x1xf32>
      %156 = vector.shape_cast %155 : vector<2x1xf32> to vector<2x1x1xf32>
      %cst_59 = arith.constant 3.906250e-03 : f32
      %157 = vector.broadcast %cst_59 : f32 to vector<2x1x1xf32>
      %158 = arith.mulf %156, %157 : vector<2x1x1xf32>
      %cst_60 = arith.constant 9.99999974E-6 : f32
      %159 = vector.broadcast %cst_60 : f32 to vector<2x1x1xf32>
      %160 = arith.addf %158, %159 : vector<2x1x1xf32>
      %161 = math.rsqrt %160 : vector<2x1x1xf32>
      %162 = vector.broadcast %161 : vector<2x1x1xf32> to vector<2x8x32xf32>
      %163 = arith.mulf %151, %162 : vector<2x8x32xf32>
      %c0_61 = arith.constant 0 : index
      %c0_62 = arith.constant 0 : index
      %c0_63 = arith.constant 0 : index
      %164 = vector.load %arg10[%c0_61, %c0_62, %c0_63] : memref<2x8x32xf32, #tpu.memory_space<vmem>>, vector<1x8x32xf32>
      %165 = vector.shape_cast %164 : vector<1x8x32xf32> to vector<8x32xf32>
      %166 = vector.shape_cast %165 : vector<8x32xf32> to vector<1x8x32xf32>
      %167 = vector.broadcast %166 : vector<1x8x32xf32> to vector<2x8x32xf32>
      %168 = arith.mulf %163, %167 : vector<2x8x32xf32>
      %c1 = arith.constant 1 : index
      %c0_64 = arith.constant 0 : index
      %c0_65 = arith.constant 0 : index
      %169 = vector.load %arg10[%c1, %c0_64, %c0_65] : memref<2x8x32xf32, #tpu.memory_space<vmem>>, vector<1x8x32xf32>
      %170 = vector.shape_cast %169 : vector<1x8x32xf32> to vector<8x32xf32>
      %171 = vector.shape_cast %170 : vector<8x32xf32> to vector<1x8x32xf32>
      %172 = vector.broadcast %171 : vector<1x8x32xf32> to vector<2x8x32xf32>
      %173 = arith.addf %168, %172 : vector<2x8x32xf32>
      %174 = vector.shape_cast %173 : vector<2x8x32xf32> to vector<16x32xf32>
      %175 = arith.truncf %174 : vector<16x32xf32> to vector<16x32xbf16>
      %c0_66 = arith.constant 0 : index
      %c0_67 = arith.constant 0 : index
      %176 = vector.load %arg11[%c0_66, %c0_67] : memref<32x128xbf16, #tpu.memory_space<vmem>>, vector<32x128xbf16>
      %cst_68 = arith.constant dense<0.000000e+00> : vector<16x128xf32>
      %177 = tpu.matmul %175, %176, %cst_68 {dimension_numbers = #tpu.dot_dimension_numbers<[1], [0], [0], [1], [0, 0, 1, 1], [], []>} : vector<16x32xbf16>, vector<32x128xbf16>, vector<16x128xf32> -> vector<16x128xf32>
      %c0_69 = arith.constant 0 : index
      %c0_70 = arith.constant 0 : index
      %178 = vector.load %arg12[%c0_69, %c0_70] : memref<1x128xf32, #tpu.memory_space<vmem>>, vector<1x128xf32>
      %179 = vector.broadcast %178 : vector<1x128xf32> to vector<16x128xf32>
      %180 = arith.addf %177, %179 : vector<16x128xf32>
      %cst_71 = arith.constant 0.000000e+00 : f32
      %181 = vector.broadcast %cst_71 : f32 to vector<16x128xf32>
      %182 = arith.maximumf %180, %181 : vector<16x128xf32>
      %183 = arith.truncf %182 : vector<16x128xf32> to vector<16x128xbf16>
      %c0_72 = arith.constant 0 : index
      %c0_73 = arith.constant 0 : index
      %184 = vector.load %arg13[%c0_72, %c0_73] : memref<128x128xbf16, #tpu.memory_space<vmem>>, vector<128x128xbf16>
      %cst_74 = arith.constant dense<0.000000e+00> : vector<16x128xf32>
      %185 = tpu.matmul %183, %184, %cst_74 {dimension_numbers = #tpu.dot_dimension_numbers<[1], [0], [0], [1], [0, 0, 1, 1], [], []>} : vector<16x128xbf16>, vector<128x128xbf16>, vector<16x128xf32> -> vector<16x128xf32>
      %c0_75 = arith.constant 0 : index
      %c0_76 = arith.constant 0 : index
      %186 = vector.load %arg14[%c0_75, %c0_76] : memref<1x128xf32, #tpu.memory_space<vmem>>, vector<1x128xf32>
      %187 = vector.broadcast %186 : vector<1x128xf32> to vector<16x128xf32>
      %188 = arith.addf %185, %187 : vector<16x128xf32>
      %cst_77 = arith.constant 0.000000e+00 : f32
      %189 = vector.broadcast %cst_77 : f32 to vector<16x128xf32>
      %190 = arith.maximumf %188, %189 : vector<16x128xf32>
      %191 = vector.shape_cast %190 : vector<16x128xf32> to vector<2x8x128xf32>
      %cst_78 = arith.constant dense<0xFF800000> : vector<2x128xf32>
      %192 = vector.multi_reduction <maximumf>, %191, %cst_78 [1] : vector<2x8x128xf32> to vector<2x128xf32>
      %193 = vector.shape_cast %192 : vector<2x128xf32> to vector<2x1x128xf32>
      %194 = vector.broadcast %193 : vector<2x1x128xf32> to vector<2x8x128xf32>
      %195 = arith.subf %191, %194 : vector<2x8x128xf32>
      %196 = math.exp %195 : vector<2x8x128xf32>
      %cst_79 = arith.constant dense<0.000000e+00> : vector<2x128xf32>
      %197 = vector.multi_reduction <add>, %196, %cst_79 [1] : vector<2x8x128xf32> to vector<2x128xf32>
      %198 = vector.shape_cast %197 : vector<2x128xf32> to vector<2x1x128xf32>
      %199 = math.log %198 : vector<2x1x128xf32>
      %200 = vector.broadcast %199 : vector<2x1x128xf32> to vector<2x8x128xf32>
      %201 = arith.subf %195, %200 : vector<2x8x128xf32>
      %cst_80 = arith.constant dense<0.000000e+00> : vector<2x128xf32>
      %202 = vector.multi_reduction <add>, %201, %cst_80 [1] : vector<2x8x128xf32> to vector<2x128xf32>
      %cst_81 = arith.constant 8.000000e+00 : f32
      %203 = vector.broadcast %cst_81 : f32 to vector<2x128xf32>
      %204 = arith.divf %202, %203 : vector<2x128xf32>
      %c0_82 = arith.constant 0 : index
      %c0_83 = arith.constant 0 : index
      %205 = vector.load %arg15[%c0_82, %c0_83] : memref<2x128xf32, #tpu.memory_space<vmem>>, vector<2x128xf32>
      tpu.vector_store %arg15[%c0_82, %c0_83], %204 {strides = array<i32>} : memref<2x128xf32, #tpu.memory_space<vmem>>, vector<2x128xf32>,
    } else {
    }
    return
  }
  func.func @transform_0(%arg0: i32) -> (i32, i32, i32) {
    %c0_i32 = arith.constant 0 : i32
    %c0_i32_0 = arith.constant 0 : i32
    %c0_i32_1 = arith.constant 0 : i32
    %c0_i32_2 = arith.constant 0 : i32
    return %c0_i32, %c0_i32_0, %c0_i32_1 : i32, i32, i32
  }
  func.func @transform_1(%arg0: i32) -> (i32, i32, i32) {
    %c0_i32 = arith.constant 0 : i32
    %c0_i32_0 = arith.constant 0 : i32
    %c0_i32_1 = arith.constant 0 : i32
    %c0_i32_2 = arith.constant 0 : i32
    return %c0_i32, %c0_i32_0, %c0_i32_1 : i32, i32, i32
  }
  func.func @transform_2(%arg0: i32) -> (i32, i32, i32) {
    %c0_i32 = arith.constant 0 : i32
    %c0_i32_0 = arith.constant 0 : i32
    %c0_i32_1 = arith.constant 0 : i32
    return %arg0, %c0_i32, %c0_i32_0 : i32, i32, i32
  }
  func.func @transform_3(%arg0: i32) -> (i32, i32, i32) {
    %c0_i32 = arith.constant 0 : i32
    %c0_i32_0 = arith.constant 0 : i32
    %c0_i32_1 = arith.constant 0 : i32
    return %arg0, %c0_i32, %c0_i32_0 : i32, i32, i32
  }
  func.func @transform_4(%arg0: i32) -> (i32, i32, i32) {
    %c0_i32 = arith.constant 0 : i32
    %c0_i32_0 = arith.constant 0 : i32
    %c0_i32_1 = arith.constant 0 : i32
    return %arg0, %c0_i32, %c0_i32_0 : i32, i32, i32
  }
  func.func @transform_5(%arg0: i32) -> (i32, i32, i32) {
    %c0_i32 = arith.constant 0 : i32
    %c0_i32_0 = arith.constant 0 : i32
    %c0_i32_1 = arith.constant 0 : i32
    return %arg0, %c0_i32, %c0_i32_0 : i32, i32, i32
  }
  func.func @transform_6(%arg0: i32) -> (i32, i32, i32) {
    %c0_i32 = arith.constant 0 : i32
    %c0_i32_0 = arith.constant 0 : i32
    %c0_i32_1 = arith.constant 0 : i32
    return %arg0, %c0_i32, %c0_i32_0 : i32, i32, i32
  }
  func.func @transform_7(%arg0: i32) -> (i32, i32, i32) {
    %c0_i32 = arith.constant 0 : i32
    %c0_i32_0 = arith.constant 0 : i32
    %c0_i32_1 = arith.constant 0 : i32
    return %arg0, %c0_i32, %c0_i32_0 : i32, i32, i32
  }
  func.func @transform_8(%arg0: i32) -> (i32, i32, i32) {
    %c0_i32 = arith.constant 0 : i32
    %c0_i32_0 = arith.constant 0 : i32
    %c0_i32_1 = arith.constant 0 : i32
    return %arg0, %c0_i32, %c0_i32_0 : i32, i32, i32
  }
  func.func @transform_9(%arg0: i32) -> (i32, i32, i32) {
    %c0_i32 = arith.constant 0 : i32
    %c0_i32_0 = arith.constant 0 : i32
    %c0_i32_1 = arith.constant 0 : i32
    %c0_i32_2 = arith.constant 0 : i32
    return %c0_i32, %c0_i32_0, %c0_i32_1 : i32, i32, i32
  }
  func.func @transform_10(%arg0: i32) -> (i32, i32) {
    %c0_i32 = arith.constant 0 : i32
    %c0_i32_0 = arith.constant 0 : i32
    %c0_i32_1 = arith.constant 0 : i32
    return %c0_i32, %c0_i32_0 : i32, i32
  }
  func.func @transform_11(%arg0: i32) -> (i32, i32) {
    %c0_i32 = arith.constant 0 : i32
    %c0_i32_0 = arith.constant 0 : i32
    %c0_i32_1 = arith.constant 0 : i32
    return %c0_i32, %c0_i32_0 : i32, i32
  }
  func.func @transform_12(%arg0: i32) -> (i32, i32) {
    %c0_i32 = arith.constant 0 : i32
    %c0_i32_0 = arith.constant 0 : i32
    %c0_i32_1 = arith.constant 0 : i32
    return %c0_i32, %c0_i32_0 : i32, i32
  }
  func.func @transform_13(%arg0: i32) -> (i32, i32) {
    %c0_i32 = arith.constant 0 : i32
    %c0_i32_0 = arith.constant 0 : i32
    %c0_i32_1 = arith.constant 0 : i32
    return %c0_i32, %c0_i32_0 : i32, i32
  }
  func.func @transform_14(%arg0: i32) -> (i32, i32) {
    %c0_i32 = arith.constant 0 : i32
    %c0_i32_0 = arith.constant 0 : i32
    %c0_i32_1 = arith.constant 0 : i32
    return %c0_i32, %c0_i32_0 : i32, i32
  }
}

</mosaic_0001>

<llo_original>
// kernel: tpu_custom_call.1
$region0: #{tpu_custom_call.1}
  #allocation0 [shape = 'u32[]', space=smem, size = 0x4, offset = 0x4, fixed_abs, tag = 'smem constant byte address 0x4 - core index']
  #allocation1 [shape = 'u32[72,128]{1,0:T(1,128)}', space=vmem, size = 0x9000, scoped, tag = 'internal scratch']
  #allocation2 [shape = 'f32[2,8,32]{2,1,0:T(8,128)}', space=vmem, size = 0x2000, scoped, tag = 'scratch operand']
  %s0 = inlined_call_operand.hbm [shape: f32[2,8,32], index: 0, kind: input, shape index: {}]
  %s1 = inlined_call_operand.vmem [shape: f32[2,1,8], index: 1, kind: input, shape index: {}]
  %s2 = inlined_call_operand.vmem [shape: bf16[2,32,96], index: 2, kind: input, shape index: {}]
  %s3 = inlined_call_operand.hbm [shape: f32[2,1,96], index: 3, kind: input, shape index: {}]
  %s4 = inlined_call_operand.hbm [shape: bf16[2,32,32], index: 4, kind: input, shape index: {}]
  %s5 = inlined_call_operand.hbm [shape: bf16[2,32,64], index: 5, kind: input, shape index: {}]
  %s6 = inlined_call_operand.hbm [shape: f32[2,1,64], index: 6, kind: input, shape index: {}]
  %s7 = inlined_call_operand.vmem [shape: bf16[2,64,32], index: 7, kind: input, shape index: {}]
  %s8 = inlined_call_operand.vmem [shape: f32[2,6,32], index: 8, kind: input, shape index: {}]
  %s9 = inlined_call_operand.hbm [shape: f32[2,8,32], index: 9, kind: input, shape index: {}]
  %s10 = inlined_call_operand.hbm [shape: bf16[32,128], index: 10, kind: input, shape index: {}]
  %s11 = inlined_call_operand.vmem [shape: f32[1,128], index: 11, kind: input, shape index: {}]
  %s12 = inlined_call_operand.vmem [shape: bf16[128,128], index: 12, kind: input, shape index: {}]
  %s13 = inlined_call_operand.vmem [shape: f32[1,128], index: 13, kind: input, shape index: {}]
  %s14 = inlined_call_operand.hbm [shape: f32[2,128], index: 14, kind: output, shape index: {}]
  %s15 = sld [smem:[#allocation0]]
  $region125: #{tpu_custom_call.1} parent=0
    _
  %s17 = ssub.s32 1, %s15
  %s18 = scalar_select 0, %s17, %s15
  $region1: #{tpu_custom_call.1} parent=0
    #allocation3 [shape = 'u8[8192]{0}', space=vmem, size = 0x2000, scoped, tag = 'input window, operand 0, single buffered']
    #allocation4 [shape = 's32[2]{0}', space=sflag, size = 0x8, scoped, tag = 'scoped memory for tpu_custom_call.1']
    #allocation5 [shape = 's32[2]{0}', space=sflag, size = 0x8, scoped, tag = 'scoped memory for tpu_custom_call.1']
    #allocation6 [shape = 'u8[1024]{0}', space=vmem, size = 0x400, scoped, tag = 'input window, operand 3']
    #allocation7 [shape = 's32[2]{0}', space=sflag, size = 0x8, scoped, tag = 'scoped memory for tpu_custom_call.1']
    #allocation8 [shape = 'u8[16384]{0}', space=vmem, size = 0x4000, scoped, tag = 'input window, operand 4']
    #allocation9 [shape = 'u8[16384]{0}', space=vmem, size = 0x4000, scoped, tag = 'input window, operand 5']
    #allocation10 [shape = 's32[2]{0}', space=sflag, size = 0x8, scoped, tag = 'scoped memory for tpu_custom_call.1']
    #allocation11 [shape = 'u8[1024]{0}', space=vmem, size = 0x400, scoped, tag = 'input window, operand 6']
    #allocation12 [shape = 'u8[8192]{0}', space=vmem, size = 0x2000, scoped, tag = 'input window, operand 9, single buffered']
    #allocation13 [shape = 's32[1]{0}', space=sflag, size = 0x4, scoped, tag = 'scoped memory for tpu_custom_call.1']
    #allocation14 [shape = 'u8[8192]{0}', space=vmem, size = 0x2000, scoped, tag = 'input window, operand 10, single buffered']
    #allocation15 [shape = 'u8[1024]{0}', space=vmem, size = 0x400, scoped, tag = 'output window, operand 0, single buffered']
    %19 = vsyncpa [#allocation4], 0
    %20 = vsyncpa [#allocation7], 0
    %s21 = scalar_lea.sflag [#allocation7], 1
    %22 = vsyncpa %s21, 0
    %23 = vsyncpa [#allocation10], 0
    %s24 = scalar_lea.sflag [#allocation10], 1
    %25 = vsyncpa %s24, 0
    %26 = vsyncpa [#allocation13], 0
    %27 = vsyncpa [#allocation5], 0
    loop: start=0, step=1, limit=4
    $region2: #{tpu_custom_call.1} parent=1 // loop_pre_header
      _
    $region3: #{tpu_custom_call.1} parent=1 // loop_header
      %s29 = sphi 0, %s33
      %p30 = scmp.ge.s32.totalorder %s29, 4
      %s37 = sphi 0, %s37
      %s39 = sphi 0, %s37
      %s40 = sphi 0, %s39
      %s54 = sphi 0, %s40
      %s58 = sphi 0, %s58
      %s60 = sphi 0, %s58
      %s61 = sphi 0, %s60
      %s75 = sphi 0, %s61
      %s81 = sphi 0, %s83
      %s84 = sphi 0, %s81
      %s85 = sphi 0, %s84
      %s101 = sphi 0, %s85
      %s107 = sphi 0, %s109
      %s110 = sphi 0, %s107
      %s111 = sphi 0, %s110
      %s127 = sphi 0, %s111
      %s133 = sphi 0, %s135
      %s136 = sphi 0, %s133
      %s137 = sphi 0, %s136
      %s153 = sphi 0, %s137
      %s159 = sphi 0, %s161
      %s162 = sphi 0, %s159
      %s163 = sphi 0, %s162
      %s179 = sphi 0, %s163
      %s185 = sphi 0, %s187
      %s188 = sphi 0, %s185
      %s189 = sphi 0, %s188
      %s205 = sphi 0, %s189
      %s211 = sphi 0, %s213
      %s214 = sphi 0, %s211
      %s215 = sphi 0, %s214
      %s231 = sphi 0, %s215
      %s237 = sphi 0, %s239
      %s240 = sphi 0, %s237
      %s241 = sphi 0, %s240
      %s257 = sphi 0, %s241
      %s261 = sphi 0, %s261
      %s263 = sphi 0, %s261
      %s264 = sphi 0, %s263
      %s278 = sphi 0, %s264
      %s282 = sphi 0, %s282
      %s284 = sphi 0, %s282
      %s285 = sphi 0, %s284
      %s299 = sphi 0, %s285
      %s303 = sphi 0, %s303
      %s305 = sphi 0, %s303
      %s306 = sphi 0, %s305
      %s320 = sphi 0, %s306
      %s324 = sphi 0, %s324
      %s326 = sphi 0, %s324
      %s327 = sphi 0, %s326
      %s341 = sphi 0, %s327
      %s345 = sphi 0, %s345
      %s347 = sphi 0, %s345
      %s348 = sphi 0, %s347
      %s362 = sphi 0, %s348
      %s366 = sphi 0, %s366
      %s368 = sphi 0, %s366
      %s369 = sphi 0, %s368
      %s383 = sphi 0, %s369
    $region4: #{tpu_custom_call.1} parent=1 // loop_header_branch
      %32 = sbr.rel (%p30) target = $region8
    $region5: #{tpu_custom_call.1} parent=1 // loop_body
      %s34 = ssub.s32 %s29, 1
      %s35 = ssub.s32 %s29, 2
      %s36 = sadd.s32 %s29, 1
      %s38 = sadd.s32 %s37, 1
      %p41 = scmp.eq.s32.totalorder %s29, 1
      %p42 = scmp.ne.s32.totalorder %s37, %s39
      %p43 = scmp.eq.s32.totalorder %s29, 0
      %p44 = por %p42, %p43
      %p45 = scmp.ne.s32.totalorder %s37, %s39
      %p46 = scmp.eq.s32.totalorder %s34, 1
      %p47 = por %p45, %p46
      %p48 = scmp.ne.s32.totalorder %s39, %s40
      %p49 = scmp.eq.s32.totalorder %s34, 0
      %p50 = por %p48, %p49
      %p51 = scmp.ne.s32.totalorder %s39, %s40
      %p52 = scmp.eq.s32.totalorder %s35, 1
      %p53 = por %p51, %p52
      %p55 = scmp.ne.s32.totalorder %s40, %s54
      %p56 = scmp.eq.s32.totalorder %s35, 0
      %p57 = por %p55, %p56
      %s59 = sadd.s32 %s58, 1
      %p62 = scmp.eq.s32.totalorder %s29, 1
      %p63 = scmp.ne.s32.totalorder %s58, %s60
      %p64 = scmp.eq.s32.totalorder %s29, 0
      %p65 = por %p63, %p64
      %p66 = scmp.ne.s32.totalorder %s58, %s60
      %p67 = scmp.eq.s32.totalorder %s34, 1
      %p68 = por %p66, %p67
      %p69 = scmp.ne.s32.totalorder %s60, %s61
      %p70 = scmp.eq.s32.totalorder %s34, 0
      %p71 = por %p69, %p70
      %p72 = scmp.ne.s32.totalorder %s60, %s61
      %p73 = scmp.eq.s32.totalorder %s35, 1
      %p74 = por %p72, %p73
      %p76 = scmp.ne.s32.totalorder %s61, %s75
      %p77 = scmp.eq.s32.totalorder %s35, 0
      %p78 = por %p76, %p77
      %s79 = ssub.s32 %s29, %s36
      %p80 = scmp.eq.s32.totalorder %s79, 0
      %s82 = sadd.s32 %s81, 1
      %s83 = scalar_select %p80, %s81, %s82
      %p86 = pneg %p80
      %p87 = scmp.eq.s32.totalorder %s29, 1
      %p88 = por %p86, %p87
      %p89 = scmp.ne.s32.totalorder %s81, %s84
      %p90 = scmp.eq.s32.totalorder %s29, 0
      %p91 = por %p89, %p90
      %p92 = scmp.ne.s32.totalorder %s81, %s84
      %p93 = scmp.eq.s32.totalorder %s34, 1
      %p94 = por %p92, %p93
      %p95 = scmp.ne.s32.totalorder %s84, %s85
      %p96 = scmp.eq.s32.totalorder %s34, 0
      %p97 = por %p95, %p96
      %p98 = scmp.ne.s32.totalorder %s84, %s85
      %p99 = scmp.eq.s32.totalorder %s35, 1
      %p100 = por %p98, %p99
      %p102 = scmp.ne.s32.totalorder %s85, %s101
      %p103 = scmp.eq.s32.totalorder %s35, 0
      %p104 = por %p102, %p103
      %s105 = ssub.s32 %s29, %s36
      %p106 = scmp.eq.s32.totalorder %s105, 0
      %s108 = sadd.s32 %s107, 1
      %s109 = scalar_select %p106, %s107, %s108
      %p112 = pneg %p106
      %p113 = scmp.eq.s32.totalorder %s29, 1
      %p114 = por %p112, %p113
      %p115 = scmp.ne.s32.totalorder %s107, %s110
      %p116 = scmp.eq.s32.totalorder %s29, 0
      %p117 = por %p115, %p116
      %p118 = scmp.ne.s32.totalorder %s107, %s110
      %p119 = scmp.eq.s32.totalorder %s34, 1
      %p120 = por %p118, %p119
      %p121 = scmp.ne.s32.totalorder %s110, %s111
      %p122 = scmp.eq.s32.totalorder %s34, 0
      %p123 = por %p121, %p122
      %p124 = scmp.ne.s32.totalorder %s110, %s111
      %p125 = scmp.eq.s32.totalorder %s35, 1
      %p126 = por %p124, %p125
      %p128 = scmp.ne.s32.totalorder %s111, %s127
      %p129 = scmp.eq.s32.totalorder %s35, 0
      %p130 = por %p128, %p129
      %s131 = ssub.s32 %s29, %s36
      %p132 = scmp.eq.s32.totalorder %s131, 0
      %s134 = sadd.s32 %s133, 1
      %s135 = scalar_select %p132, %s133, %s134
      %p138 = pneg %p132
      %p139 = scmp.eq.s32.totalorder %s29, 1
      %p140 = por %p138, %p139
      %p141 = scmp.ne.s32.totalorder %s133, %s136
      %p142 = scmp.eq.s32.totalorder %s29, 0
      %p143 = por %p141, %p142
      %p144 = scmp.ne.s32.totalorder %s133, %s136
      %p145 = scmp.eq.s32.totalorder %s34, 1
      %p146 = por %p144, %p145
      %p147 = scmp.ne.s32.totalorder %s136, %s137
      %p148 = scmp.eq.s32.totalorder %s34, 0
      %p149 = por %p147, %p148
      %p150 = scmp.ne.s32.totalorder %s136, %s137
      %p151 = scmp.eq.s32.totalorder %s35, 1
      %p152 = por %p150, %p151
      %p154 = scmp.ne.s32.totalorder %s137, %s153
      %p155 = scmp.eq.s32.totalorder %s35, 0
      %p156 = por %p154, %p155
      %s157 = ssub.s32 %s29, %s36
      %p158 = scmp.eq.s32.totalorder %s157, 0
      %s160 = sadd.s32 %s159, 1
      %s161 = scalar_select %p158, %s159, %s160
      %p164 = pneg %p158
      %p165 = scmp.eq.s32.totalorder %s29, 1
      %p166 = por %p164, %p165
      %p167 = scmp.ne.s32.totalorder %s159, %s162
      %p168 = scmp.eq.s32.totalorder %s29, 0
      %p169 = por %p167, %p168
      %p170 = scmp.ne.s32.totalorder %s159, %s162
      %p171 = scmp.eq.s32.totalorder %s34, 1
      %p172 = por %p170, %p171
      %p173 = scmp.ne.s32.totalorder %s162, %s163
      %p174 = scmp.eq.s32.totalorder %s34, 0
      %p175 = por %p173, %p174
      %p176 = scmp.ne.s32.totalorder %s162, %s163
      %p177 = scmp.eq.s32.totalorder %s35, 1
      %p178 = por %p176, %p177
      %p180 = scmp.ne.s32.totalorder %s163, %s179
      %p181 = scmp.eq.s32.totalorder %s35, 0
      %p182 = por %p180, %p181
      %s183 = ssub.s32 %s29, %s36
      %p184 = scmp.eq.s32.totalorder %s183, 0
      %s186 = sadd.s32 %s185, 1
      %s187 = scalar_select %p184, %s185, %s186
      %p190 = pneg %p184
      %p191 = scmp.eq.s32.totalorder %s29, 1
      %p192 = por %p190, %p191
      %p193 = scmp.ne.s32.totalorder %s185, %s188
      %p194 = scmp.eq.s32.totalorder %s29, 0
      %p195 = por %p193, %p194
      %p196 = scmp.ne.s32.totalorder %s185, %s188
      %p197 = scmp.eq.s32.totalorder %s34, 1
      %p198 = por %p196, %p197
      %p199 = scmp.ne.s32.totalorder %s188, %s189
      %p200 = scmp.eq.s32.totalorder %s34, 0
      %p201 = por %p199, %p200
      %p202 = scmp.ne.s32.totalorder %s188, %s189
      %p203 = scmp.eq.s32.totalorder %s35, 1
      %p204 = por %p202, %p203
      %p206 = scmp.ne.s32.totalorder %s189, %s205
      %p207 = scmp.eq.s32.totalorder %s35, 0
      %p208 = por %p206, %p207
      %s209 = ssub.s32 %s29, %s36
      %p210 = scmp.eq.s32.totalorder %s209, 0
      %s212 = sadd.s32 %s211, 1
      %s213 = scalar_select %p210, %s211, %s212
      %p216 = pneg %p210
      %p217 = scmp.eq.s32.totalorder %s29, 1
      %p218 = por %p216, %p217
      %p219 = scmp.ne.s32.totalorder %s211, %s214
      %p220 = scmp.eq.s32.totalorder %s29, 0
      %p221 = por %p219, %p220
      %p222 = scmp.ne.s32.totalorder %s211, %s214
      %p223 = scmp.eq.s32.totalorder %s34, 1
      %p224 = por %p222, %p223
      %p225 = scmp.ne.s32.totalorder %s214, %s215
      %p226 = scmp.eq.s32.totalorder %s34, 0
      %p227 = por %p225, %p226
      %p228 = scmp.ne.s32.totalorder %s214, %s215
      %p229 = scmp.eq.s32.totalorder %s35, 1
      %p230 = por %p228, %p229
      %p232 = scmp.ne.s32.totalorder %s215, %s231
      %p233 = scmp.eq.s32.totalorder %s35, 0
      %p234 = por %p232, %p233
      %s235 = ssub.s32 %s29, %s36
      %p236 = scmp.eq.s32.totalorder %s235, 0
      %s238 = sadd.s32 %s237, 1
      %s239 = scalar_select %p236, %s237, %s238
      %p242 = pneg %p236
      %p243 = scmp.eq.s32.totalorder %s29, 1
      %p244 = por %p242, %p243
      %p245 = scmp.ne.s32.totalorder %s237, %s240
      %p246 = scmp.eq.s32.totalorder %s29, 0
      %p247 = por %p245, %p246
      %p248 = scmp.ne.s32.totalorder %s237, %s240
      %p249 = scmp.eq.s32.totalorder %s34, 1
      %p250 = por %p248, %p249
      %p251 = scmp.ne.s32.totalorder %s240, %s241
      %p252 = scmp.eq.s32.totalorder %s34, 0
      %p253 = por %p251, %p252
      %p254 = scmp.ne.s32.totalorder %s240, %s241
      %p255 = scmp.eq.s32.totalorder %s35, 1
      %p256 = por %p254, %p255
      %p258 = scmp.ne.s32.totalorder %s241, %s257
      %p259 = scmp.eq.s32.totalorder %s35, 0
      %p260 = por %p258, %p259
      %s262 = sadd.s32 %s261, 1
      %p265 = scmp.eq.s32.totalorder %s29, 1
      %p266 = scmp.ne.s32.totalorder %s261, %s263
      %p267 = scmp.eq.s32.totalorder %s29, 0
      %p268 = por %p266, %p267
      %p269 = scmp.ne.s32.totalorder %s261, %s263
      %p270 = scmp.eq.s32.totalorder %s34, 1
      %p271 = por %p269, %p270
      %p272 = scmp.ne.s32.totalorder %s263, %s264
      %p273 = scmp.eq.s32.totalorder %s34, 0
      %p274 = por %p272, %p273
      %p275 = scmp.ne.s32.totalorder %s263, %s264
      %p276 = scmp.eq.s32.totalorder %s35, 1
      %p277 = por %p275, %p276
      %p279 = scmp.ne.s32.totalorder %s264, %s278
      %p280 = scmp.eq.s32.totalorder %s35, 0
      %p281 = por %p279, %p280
      %s283 = sadd.s32 %s282, 1
      %p286 = scmp.eq.s32.totalorder %s29, 1
      %p287 = scmp.ne.s32.totalorder %s282, %s284
      %p288 = scmp.eq.s32.totalorder %s29, 0
      %p289 = por %p287, %p288
      %p290 = scmp.ne.s32.totalorder %s282, %s284
      %p291 = scmp.eq.s32.totalorder %s34, 1
      %p292 = por %p290, %p291
      %p293 = scmp.ne.s32.totalorder %s284, %s285
      %p294 = scmp.eq.s32.totalorder %s34, 0
      %p295 = por %p293, %p294
      %p296 = scmp.ne.s32.totalorder %s284, %s285
      %p297 = scmp.eq.s32.totalorder %s35, 1
      %p298 = por %p296, %p297
      %p300 = scmp.ne.s32.totalorder %s285, %s299
      %p301 = scmp.eq.s32.totalorder %s35, 0
      %p302 = por %p300, %p301
      %s304 = sadd.s32 %s303, 1
      %p307 = scmp.eq.s32.totalorder %s29, 1
      %p308 = scmp.ne.s32.totalorder %s303, %s305
      %p309 = scmp.eq.s32.totalorder %s29, 0
      %p310 = por %p308, %p309
      %p311 = scmp.ne.s32.totalorder %s303, %s305
      %p312 = scmp.eq.s32.totalorder %s34, 1
      %p313 = por %p311, %p312
      %p314 = scmp.ne.s32.totalorder %s305, %s306
      %p315 = scmp.eq.s32.totalorder %s34, 0
      %p316 = por %p314, %p315
      %p317 = scmp.ne.s32.totalorder %s305, %s306
      %p318 = scmp.eq.s32.totalorder %s35, 1
      %p319 = por %p317, %p318
      %p321 = scmp.ne.s32.totalorder %s306, %s320
      %p322 = scmp.eq.s32.totalorder %s35, 0
      %p323 = por %p321, %p322
      %s325 = sadd.s32 %s324, 1
      %p328 = scmp.eq.s32.totalorder %s29, 1
      %p329 = scmp.ne.s32.totalorder %s324, %s326
      %p330 = scmp.eq.s32.totalorder %s29, 0
      %p331 = por %p329, %p330
      %p332 = scmp.ne.s32.totalorder %s324, %s326
      %p333 = scmp.eq.s32.totalorder %s34, 1
      %p334 = por %p332, %p333
      %p335 = scmp.ne.s32.totalorder %s326, %s327
      %p336 = scmp.eq.s32.totalorder %s34, 0
      %p337 = por %p335, %p336
      %p338 = scmp.ne.s32.totalorder %s326, %s327
      %p339 = scmp.eq.s32.totalorder %s35, 1
      %p340 = por %p338, %p339
      %p342 = scmp.ne.s32.totalorder %s327, %s341
      %p343 = scmp.eq.s32.totalorder %s35, 0
      %p344 = por %p342, %p343
      %s346 = sadd.s32 %s345, 1
      %p349 = scmp.eq.s32.totalorder %s29, 1
      %p350 = scmp.ne.s32.totalorder %s345, %s347
      %p351 = scmp.eq.s32.totalorder %s29, 0
      %p352 = por %p350, %p351
      %p353 = scmp.ne.s32.totalorder %s345, %s347
      %p354 = scmp.eq.s32.totalorder %s34, 1
      %p355 = por %p353, %p354
      %p356 = scmp.ne.s32.totalorder %s347, %s348
      %p357 = scmp.eq.s32.totalorder %s34, 0
      %p358 = por %p356, %p357
      %p359 = scmp.ne.s32.totalorder %s347, %s348
      %p360 = scmp.eq.s32.totalorder %s35, 1
      %p361 = por %p359, %p360
      %p363 = scmp.ne.s32.totalorder %s348, %s362
      %p364 = scmp.eq.s32.totalorder %s35, 0
      %p365 = por %p363, %p364
      %s367 = sadd.s32 %s366, 1
      %p370 = scmp.eq.s32.totalorder %s29, 1
      %p371 = scmp.ne.s32.totalorder %s366, %s368
      %p372 = scmp.eq.s32.totalorder %s29, 0
      %p373 = por %p371, %p372
      %p374 = scmp.ne.s32.totalorder %s366, %s368
      %p375 = scmp.eq.s32.totalorder %s34, 1
      %p376 = por %p374, %p375
      %p377 = scmp.ne.s32.totalorder %s368, %s369
      %p378 = scmp.eq.s32.totalorder %s34, 0
      %p379 = por %p377, %p378
      %p380 = scmp.ne.s32.totalorder %s368, %s369
      %p381 = scmp.eq.s32.totalorder %s35, 1
      %p382 = por %p380, %p381
      %p384 = scmp.ne.s32.totalorder %s369, %s383
      %p385 = scmp.eq.s32.totalorder %s35, 0
      %p386 = por %p384, %p385
      %p387 = scmp.le.s32.totalorder 1, %s29
      %p388 = scmp.lt.s32.totalorder %s29, 3
      %p389 = pnand %p387, %p388
      %p390 = pneg %p389
      // Predicated region
      $region9: #{tpu_custom_call.1} parent=5 // pred_check
        _
      $region10: #{tpu_custom_call.1} parent=5 // pred_check_branch
        %392 = sbr.rel (%p389) target = $region12
      $region11: #{tpu_custom_call.1} parent=5 // pred_region
        %s393 = ssub.s32 %s29, 1
        // Predicated region
        $region13: #{tpu_custom_call.1} parent=11 // pred_check
          %p394 = pneg %p50
        $region14: #{tpu_custom_call.1} parent=11 // pred_check_branch
          %396 = sbr.rel (%p394) target = $region16
        $region15: #{tpu_custom_call.1} parent=11 // pred_region
          %398 = vsyncadd [#allocation4], 0
          %s399 = sshll.u32 %s0, 4
          %s400 = int_to_ptr.hbm [resolvable:$true] %s399
          %s401 = sshll.u32 [#allocation3], 4
          %s402 = int_to_ptr.vmem [resolvable:$true] %s401
          %407 = dma.hbm_to_vmem [thread:$0]  %s400, 256, %s402, [#allocation4], 128, 128, 8
        $region16: #{tpu_custom_call.1} parent=11 // pred_fallthru
          _
        // Predicated region
        $region17: #{tpu_custom_call.1} parent=11 // pred_check
          %p408 = pneg %p71
        $region18: #{tpu_custom_call.1} parent=11 // pred_check_branch
          %410 = sbr.rel (%p408) target = $region20
        $region19: #{tpu_custom_call.1} parent=11 // pred_region
          _
        $region20: #{tpu_custom_call.1} parent=11 // pred_fallthru
          _
        // Predicated region
        $region21: #{tpu_custom_call.1} parent=11 // pred_check
          %p411 = pneg %p274
        $region22: #{tpu_custom_call.1} parent=11 // pred_check_branch
          %413 = sbr.rel (%p411) target = $region24
        $region23: #{tpu_custom_call.1} parent=11 // pred_region
          %415 = vsyncadd [#allocation13], 0
          %s416 = sshll.u32 %s9, 4
          %s417 = int_to_ptr.hbm [resolvable:$true] %s416
          %s418 = sshll.u32 [#allocation12], 4
          %s419 = int_to_ptr.vmem [resolvable:$true] %s418
          %424 = dma.hbm_to_vmem [thread:$0]  %s417, 256, %s419, [#allocation13], 128, 128, 8
        $region24: #{tpu_custom_call.1} parent=11 // pred_fallthru
          _
        // Predicated region
        $region25: #{tpu_custom_call.1} parent=11 // pred_check
          %p425 = pneg %p295
        $region26: #{tpu_custom_call.1} parent=11 // pred_check_branch
          %427 = sbr.rel (%p425) target = $region28
        $region27: #{tpu_custom_call.1} parent=11 // pred_region
          %429 = vsyncadd [#allocation13], 0
          %s430 = sshll.u32 %s10, 4
          %s431 = int_to_ptr.hbm [resolvable:$true] %s430
          %s432 = sshll.u32 [#allocation14], 4
          %s433 = int_to_ptr.vmem [resolvable:$true] %s432
          %438 = dma.hbm_to_vmem [thread:$0]  %s431, 256, %s433, [#allocation13], 64, 64, 4
        $region28: #{tpu_custom_call.1} parent=11 // pred_fallthru
          _
        // Predicated region
        $region29: #{tpu_custom_call.1} parent=11 // pred_check
          %p439 = pneg %p316
        $region30: #{tpu_custom_call.1} parent=11 // pred_check_branch
          %441 = sbr.rel (%p439) target = $region32
        $region31: #{tpu_custom_call.1} parent=11 // pred_region
          _
        $region32: #{tpu_custom_call.1} parent=11 // pred_fallthru
          _
        // Predicated region
        $region33: #{tpu_custom_call.1} parent=11 // pred_check
          %p442 = pneg %p337
        $region34: #{tpu_custom_call.1} parent=11 // pred_check_branch
          %444 = sbr.rel (%p442) target = $region36
        $region35: #{tpu_custom_call.1} parent=11 // pred_region
          _
        $region36: #{tpu_custom_call.1} parent=11 // pred_fallthru
          _
        // Predicated region
        $region37: #{tpu_custom_call.1} parent=11 // pred_check
          %p445 = pneg %p358
        $region38: #{tpu_custom_call.1} parent=11 // pred_check_branch
          %447 = sbr.rel (%p445) target = $region40
        $region39: #{tpu_custom_call.1} parent=11 // pred_region
          _
        $region40: #{tpu_custom_call.1} parent=11 // pred_fallthru
          _
      $region12: #{tpu_custom_call.1} parent=5 // pred_fallthru
        _
      %p448 = scmp.lt.s32.totalorder %s29, 2
      // Predicated region
      $region41: #{tpu_custom_call.1} parent=5 // pred_check
        %p449 = pneg %p448
      $region42: #{tpu_custom_call.1} parent=5 // pred_check_branch
        %451 = sbr.rel (%p449) target = $region44
      $region43: #{tpu_custom_call.1} parent=5 // pred_region
        // Predicated region
        $region45: #{tpu_custom_call.1} parent=43 // pred_check
          %p452 = pneg %p91
        $region46: #{tpu_custom_call.1} parent=43 // pred_check_branch
          %454 = sbr.rel (%p452) target = $region48
        $region47: #{tpu_custom_call.1} parent=43 // pred_region
          %p455 = scmp.lt.s32.totalorder %s29, 1
          %s456 = scalar_select %p455, %s29, 1
          %s457 = smul.addr %s456, 4
          %s458 = smul.addr %s457, 4
          %s459 = scalar_lea.vmem %s2, %s458
        $region48: #{tpu_custom_call.1} parent=43 // pred_fallthru
          _
        // Predicated region
        $region49: #{tpu_custom_call.1} parent=43 // pred_check
          %p460 = pneg %p117
        $region50: #{tpu_custom_call.1} parent=43 // pred_check_branch
          %462 = sbr.rel (%p460) target = $region52
        $region51: #{tpu_custom_call.1} parent=43 // pred_region
          %s463 = sand.u32 %s29, 1
          %s464 = scalar_lea.sflag [#allocation7], %s463
          %s465 = sand.u32 %s107, 1
          %s466 = scalar_lea.vmem [#allocation6], %s465
          %468 = vsyncadd %s464, 0
          %s469 = scalar_lea.hbm %s3, %s29
          %s471 = sshll.u32 %s469, 4
          %s472 = int_to_ptr.hbm [resolvable:$true] %s471
          %s473 = sshll.u32 %s466, 4
          %s474 = int_to_ptr.vmem [resolvable:$true] %s473
          %476 = dma.hbm_to_vmem [thread:$0]  %s472, 16, %s474, %s464
        $region52: #{tpu_custom_call.1} parent=43 // pred_fallthru
          _
        // Predicated region
        $region53: #{tpu_custom_call.1} parent=43 // pred_check
          %p477 = pneg %p143
        $region54: #{tpu_custom_call.1} parent=43 // pred_check_branch
          %479 = sbr.rel (%p477) target = $region56
        $region55: #{tpu_custom_call.1} parent=43 // pred_region
          %s480 = sand.u32 %s29, 1
          %s481 = scalar_lea.sflag [#allocation7], %s480
          %s482 = sand.u32 %s133, 1
          %s483 = smul.addr %s482, 16
          %s484 = scalar_lea.vmem [#allocation8], %s483
          %486 = vsyncadd %s481, 0
          %s487 = smul.addr %s29, 4
          %s488 = smul.addr %s487, 4
          %s489 = scalar_lea.hbm %s4, %s488
          %s490 = sshll.u32 %s489, 4
          %s491 = int_to_ptr.hbm [resolvable:$true] %s490
          %s492 = sshll.u32 %s484, 4
          %s493 = int_to_ptr.vmem [resolvable:$true] %s492
          %498 = dma.hbm_to_vmem [thread:$0]  %s491, 256, %s493, %s481, 64, 64, 4
        $region56: #{tpu_custom_call.1} parent=43 // pred_fallthru
          _
        // Predicated region
        $region57: #{tpu_custom_call.1} parent=43 // pred_check
          %p499 = pneg %p169
        $region58: #{tpu_custom_call.1} parent=43 // pred_check_branch
          %501 = sbr.rel (%p499) target = $region60
        $region59: #{tpu_custom_call.1} parent=43 // pred_region
          %s502 = sand.u32 %s29, 1
          %s503 = scalar_lea.sflag [#allocation10], %s502
          %s504 = sand.u32 %s159, 1
          %s505 = smul.addr %s504, 16
          %s506 = scalar_lea.vmem [#allocation9], %s505
          %508 = vsyncadd %s503, 0
          %s509 = smul.addr %s29, 4
          %s510 = smul.addr %s509, 4
          %s511 = scalar_lea.hbm %s5, %s510
          %s512 = sshll.u32 %s511, 4
          %s513 = int_to_ptr.hbm [resolvable:$true] %s512
          %s514 = sshll.u32 %s506, 4
          %s515 = int_to_ptr.vmem [resolvable:$true] %s514
          %520 = dma.hbm_to_vmem [thread:$0]  %s513, 256, %s515, %s503, 64, 64, 4
        $region60: #{tpu_custom_call.1} parent=43 // pred_fallthru
          _
        // Predicated region
        $region61: #{tpu_custom_call.1} parent=43 // pred_check
          %p521 = pneg %p195
        $region62: #{tpu_custom_call.1} parent=43 // pred_check_branch
          %523 = sbr.rel (%p521) target = $region64
        $region63: #{tpu_custom_call.1} parent=43 // pred_region
          %s524 = sand.u32 %s29, 1
          %s525 = scalar_lea.sflag [#allocation10], %s524
          %s526 = sand.u32 %s185, 1
          %s527 = scalar_lea.vmem [#allocation11], %s526
          %529 = vsyncadd %s525, 0
          %s530 = scalar_lea.hbm %s6, %s29
          %s532 = sshll.u32 %s530, 4
          %s533 = int_to_ptr.hbm [resolvable:$true] %s532
          %s534 = sshll.u32 %s527, 4
          %s535 = int_to_ptr.vmem [resolvable:$true] %s534
          %537 = dma.hbm_to_vmem [thread:$0]  %s533, 16, %s535, %s525
        $region64: #{tpu_custom_call.1} parent=43 // pred_fallthru
          _
        // Predicated region
        $region65: #{tpu_custom_call.1} parent=43 // pred_check
          %p538 = pneg %p221
        $region66: #{tpu_custom_call.1} parent=43 // pred_check_branch
          %540 = sbr.rel (%p538) target = $region68
        $region67: #{tpu_custom_call.1} parent=43 // pred_region
          %p541 = scmp.lt.s32.totalorder %s29, 1
          %s542 = scalar_select %p541, %s29, 1
          %s543 = smul.addr %s542, 8
          %s544 = smul.addr %s543, 4
          %s545 = scalar_lea.vmem %s7, %s544
        $region68: #{tpu_custom_call.1} parent=43 // pred_fallthru
          _
        // Predicated region
        $region69: #{tpu_custom_call.1} parent=43 // pred_check
          %p546 = pneg %p247
        $region70: #{tpu_custom_call.1} parent=43 // pred_check_branch
          %548 = sbr.rel (%p546) target = $region72
        $region71: #{tpu_custom_call.1} parent=43 // pred_region
          %p549 = scmp.lt.s32.totalorder %s29, 1
          %s550 = scalar_select %p549, %s29, 1
          %s551 = smul.addr %s550, 8
          %s552 = scalar_lea.vmem %s8, %s551
        $region72: #{tpu_custom_call.1} parent=43 // pred_fallthru
          _
      $region44: #{tpu_custom_call.1} parent=5 // pred_fallthru
        _
      %p553 = scmp.le.s32.totalorder 1, %s29
      %p554 = scmp.lt.s32.totalorder %s29, 3
      %p555 = pnand %p553, %p554
      %p556 = pneg %p555
      // Predicated region
      $region73: #{tpu_custom_call.1} parent=5 // pred_check
        _
      $region74: #{tpu_custom_call.1} parent=5 // pred_check_branch
        %558 = sbr.rel (%p555) target = $region76
      $region75: #{tpu_custom_call.1} parent=5 // pred_region
        %s559 = ssub.s32 %s29, 1
        // Predicated region
        $region77: #{tpu_custom_call.1} parent=75 // pred_check
          %p560 = pneg %p50
        $region78: #{tpu_custom_call.1} parent=75 // pred_check_branch
          %562 = sbr.rel (%p560) target = $region80
        $region79: #{tpu_custom_call.1} parent=75 // pred_region
          %564 = dma.done [#allocation4], 256
        $region80: #{tpu_custom_call.1} parent=75 // pred_fallthru
          _
        %s565 = sand.u32 %s34, 1
        %s566 = scalar_lea.sflag [#allocation7], %s565
        %s567 = sand.u32 %s110, 1
        %s568 = scalar_lea.vmem [#allocation6], %s567
        // Predicated region
        $region81: #{tpu_custom_call.1} parent=75 // pred_check
          %p569 = pneg %p123
        $region82: #{tpu_custom_call.1} parent=75 // pred_check_branch
          %571 = sbr.rel (%p569) target = $region84
        $region83: #{tpu_custom_call.1} parent=75 // pred_region
          %573 = dma.done %s566, 16
        $region84: #{tpu_custom_call.1} parent=75 // pred_fallthru
          _
        %s574 = sand.u32 %s34, 1
        %s575 = scalar_lea.sflag [#allocation7], %s574
        %s576 = sand.u32 %s136, 1
        %s577 = smul.addr %s576, 16
        %s578 = scalar_lea.vmem [#allocation8], %s577
        // Predicated region
        $region85: #{tpu_custom_call.1} parent=75 // pred_check
          %p579 = pneg %p149
        $region86: #{tpu_custom_call.1} parent=75 // pred_check_branch
          %581 = sbr.rel (%p579) target = $region88
        $region87: #{tpu_custom_call.1} parent=75 // pred_region
          %583 = dma.done %s575, 256
        $region88: #{tpu_custom_call.1} parent=75 // pred_fallthru
          _
        %s584 = sand.u32 %s34, 1
        %s585 = scalar_lea.sflag [#allocation10], %s584
        %s586 = sand.u32 %s162, 1
        %s587 = smul.addr %s586, 16
        %s588 = scalar_lea.vmem [#allocation9], %s587
        // Predicated region
        $region89: #{tpu_custom_call.1} parent=75 // pred_check
          %p589 = pneg %p175
        $region90: #{tpu_custom_call.1} parent=75 // pred_check_branch
          %591 = sbr.rel (%p589) target = $region92
        $region91: #{tpu_custom_call.1} parent=75 // pred_region
          %593 = dma.done %s585, 256
        $region92: #{tpu_custom_call.1} parent=75 // pred_fallthru
          _
        %s594 = sand.u32 %s34, 1
        %s595 = scalar_lea.sflag [#allocation10], %s594
        %s596 = sand.u32 %s188, 1
        %s597 = scalar_lea.vmem [#allocation11], %s596
        // Predicated region
        $region93: #{tpu_custom_call.1} parent=75 // pred_check
          %p598 = pneg %p201
        $region94: #{tpu_custom_call.1} parent=75 // pred_check_branch
          %600 = sbr.rel (%p598) target = $region96
        $region95: #{tpu_custom_call.1} parent=75 // pred_region
          %602 = dma.done %s595, 16
        $region96: #{tpu_custom_call.1} parent=75 // pred_fallthru
          _
        // Predicated region
        $region97: #{tpu_custom_call.1} parent=75 // pred_check
          %p603 = pneg %p274
        $region98: #{tpu_custom_call.1} parent=75 // pred_check_branch
          %605 = sbr.rel (%p603) target = $region100
        $region99: #{tpu_custom_call.1} parent=75 // pred_region
          %607 = dma.done [#allocation13], 256
        $region100: #{tpu_custom_call.1} parent=75 // pred_fallthru
          _
        // Predicated region
        $region101: #{tpu_custom_call.1} parent=75 // pred_check
          %p608 = pneg %p295
        $region102: #{tpu_custom_call.1} parent=75 // pred_check_branch
          %610 = sbr.rel (%p608) target = $region104
        $region103: #{tpu_custom_call.1} parent=75 // pred_region
          %612 = dma.done [#allocation13], 256
        $region104: #{tpu_custom_call.1} parent=75 // pred_fallthru
          _
        %p613 = pneg %p50
        %p614 = pneg %p47
        %p615 = pneg %p71
        %p616 = pneg %p68
        %p617 = scmp.lt.s32.totalorder %s34, 1
        %s618 = scalar_select %p617, %s34, 1
        %s619 = smul.addr %s618, 4
        %s620 = smul.addr %s619, 4
        %s621 = scalar_lea.vmem %s2, %s620
        %p622 = pneg %p97
        %p623 = pneg %p94
        %s624 = sand.u32 %s34, 1
        %s625 = scalar_lea.sflag [#allocation7], %s624
        %s626 = sand.u32 %s110, 1
        %s627 = scalar_lea.vmem [#allocation6], %s626
        %p628 = pneg %p123
        %p629 = pneg %p120
        %s630 = sand.u32 %s34, 1
        %s631 = scalar_lea.sflag [#allocation7], %s630
        %s632 = sand.u32 %s136, 1
        %s633 = smul.addr %s632, 16
        %s634 = scalar_lea.vmem [#allocation8], %s633
        %p635 = pneg %p149
        %p636 = pneg %p146
        %s637 = sand.u32 %s34, 1
        %s638 = scalar_lea.sflag [#allocation10], %s637
        %s639 = sand.u32 %s162, 1
        %s640 = smul.addr %s639, 16
        %s641 = scalar_lea.vmem [#allocation9], %s640
        %p642 = pneg %p175
        %p643 = pneg %p172
        %s644 = sand.u32 %s34, 1
        %s645 = scalar_lea.sflag [#allocation10], %s644
        %s646 = sand.u32 %s188, 1
        %s647 = scalar_lea.vmem [#allocation11], %s646
        %p648 = pneg %p201
        %p649 = pneg %p198
        %p650 = scmp.lt.s32.totalorder %s34, 1
        %s651 = scalar_select %p650, %s34, 1
        %s652 = smul.addr %s651, 8
        %s653 = smul.addr %s652, 4
        %s654 = scalar_lea.vmem %s7, %s653
        %p655 = pneg %p227
        %p656 = pneg %p224
        %p657 = scmp.lt.s32.totalorder %s34, 1
        %s658 = scalar_select %p657, %s34, 1
        %s659 = smul.addr %s658, 8
        %s660 = scalar_lea.vmem %s8, %s659
        %p661 = pneg %p253
        %p662 = pneg %p250
        %p663 = pneg %p274
        %p664 = pneg %p271
        %p665 = pneg %p295
        %p666 = pneg %p292
        %p667 = pneg %p316
        %p668 = pneg %p313
        %p669 = pneg %p337
        %p670 = pneg %p334
        %p671 = pneg %p358
        %p672 = pneg %p355
        %p673 = pneg %p379
        %p674 = pneg %p376
        %p675 = scmp.lt.s32.totalorder %s34, 1
        %s676 = scalar_select %p675, %s34, 1
        %s677 = smul.addr %s676, 4
        %s678 = smul.addr %s677, 4
        %s679 = scalar_lea.vmem %s2, %s678
        %p680 = scmp.lt.s32.totalorder %s34, 1
        %s681 = scalar_select %p680, %s34, 1
        %s682 = smul.addr %s681, 8
        %s683 = smul.addr %s682, 4
        %s684 = scalar_lea.vmem %s7, %s683
        %p685 = scmp.lt.s32.totalorder %s34, 1
        %s686 = scalar_select %p685, %s34, 1
        %s687 = smul.addr %s686, 8
        %s688 = scalar_lea.vmem %s8, %s687
        %p690 = scmp.eq.s32.totalorder %s34, 0
        // Predicated region
        $region105: #{tpu_custom_call.1} parent=75 // pred_check
          %p691 = pneg %p690
        $region106: #{tpu_custom_call.1} parent=75 // pred_check_branch
          %693 = sbr.rel (%p691) target = $region108
        $region107: #{tpu_custom_call.1} parent=75 // pred_region
          %v694 = vld [vmem:[#allocation3] sm:$0xff]
          %v695 = vld [vmem:[#allocation3 + $0x8] sm:$0xff]
          %vm696 = vcmask 261120
          %697 = vst.msk [vmem:[#allocation2] sm:$0xff] %vm696, %v694
          %698 = vst.msk [vmem:[#allocation2 + $0x8] sm:$0xff] %vm696, %v695
        $region108: #{tpu_custom_call.1} parent=75 // pred_fallthru
          _
        %v699 = vld [vmem:[#allocation2] sm:$0xff]
        %v700 = vld [vmem:[#allocation2 + $0x8] sm:$0xff]
        %v701 = vld [vmem:[%s1] sm:$0x1]
        %v702 = vld [vmem:[%s1 + $0x1] sm:$0x1]
        %v703 = vsub.f32 %v701, 1.0
        %v704 = vsub.f32 %v702, 1.0
        %v705 = vmul.f32 %v703, 1e+09
        %v706 = vmul.f32 %v704, 1e+09
        %v707 = vld [vmem:[%s679] sm:$0xf]
        %v708 = vld [vmem:[%s679 + $0x4] sm:$0xf]
        %v709 = vld [vmem:[%s679 + $0x8] sm:$0xf]
        %v710 = vld [vmem:[%s679 + $0xc] sm:$0xf]
        %v711 = vld [vmem:[%s568] sm:$0x1]
        %v712 = vld [vmem:[%s578] sm:$0xf]
        %v713 = vld [vmem:[%s578 + $0x4] sm:$0xf]
        %v714 = vld [vmem:[%s578 + $0x8] sm:$0xf]
        %v715 = vld [vmem:[%s578 + $0xc] sm:$0xf]
        %v716 = vld [vmem:[%s588] sm:$0xf]
        %v717 = vld [vmem:[%s588 + $0x4] sm:$0xf]
        %v718 = vld [vmem:[%s588 + $0x8] sm:$0xf]
        %v719 = vld [vmem:[%s588 + $0xc] sm:$0xf]
        %v720 = vld [vmem:[%s597] sm:$0x1]
        %v721 = vld [vmem:[%s684] sm:$0xf]
        %v722 = vld [vmem:[%s684 + $0x4] sm:$0xf]
        %v723 = vld [vmem:[%s684 + $0x8] sm:$0xf]
        %v724 = vld [vmem:[%s684 + $0xc] sm:$0xf]
        %v725 = vld [vmem:[%s684 + $0x10] sm:$0xf]
        %v726 = vld [vmem:[%s684 + $0x14] sm:$0xf]
        %v727 = vld [vmem:[%s684 + $0x18] sm:$0xf]
        %v728 = vld [vmem:[%s684 + $0x1c] sm:$0xf]
        %v729 = vld [vmem:[%s688] sm:$0x3f]
        %v730 = vpack.c.bf16 %v700, %v699
        %v732 = vperm.slane %v711, 0
        %v738 = vunpack.c.l.b16 %v707
        %v739 = vunpack.c.l.b16 %v708
        %v740 = vunpack.c.l.b16 %v709
        %v741 = vunpack.c.l.b16 %v710
        %v742 = vpack.c.b16 %v739, %v738
        %v743 = vpack.c.b16 %v741, %v740
        %vm746 = vcmask 261120
        %v748 = vsel %vm746, %v730, 0
        %750 = vmatpush.bf16.msra.mxu0 0
        %751 = vmatpush.bf16.msra.mxu0 0
        %752 = vmatpush.bf16.msra.mxu0 0
        %753 = vmatpush.bf16.msra.mxu0 0
        %754 = vmatpush.bf16.msra.mxu0 0
        %755 = vmatpush.bf16.msra.mxu0 0
        %756 = vmatpush.bf16.msra.mxu0 %v743
        %757 = vmatpush.bf16.msra.mxu0 %v742
        %758 = vmatmul.bf16.gmra.mxu0 %v748
        %v759 = vpop.f32.mrf.mxu0
        %v760 = vadd.f32 %v732, %v759
        %v761 = vpop.f32.mrf.mxu0
        %v762 = vadd.f32 %v732, %v761
        %763 = vdwg.mxu0
        %766 = vrot.lane.b32.xlu0 %v760, 112
        %v767 = vpop.permute.xlu0 %766
        %768 = vrot.lane.b32.xlu0 %v762, 112
        %v769 = vpop.permute.xlu0 %768
        %v772 = vpack.c.bf16 %v760, %v760
        %v773 = vpack.c.bf16 %v762, %v762
        %v774 = vpack.c.bf16 %v767, %v767
        %v775 = vpack.c.bf16 %v769, %v769
        %v778 = vperm.slane %v705, 0
        %v779 = vperm.slane %v706, 0
        %v783 = vunpack.c.l.b16 %v772
        %v784 = vpack.c.b16 %v783, %v783
        %785 = vrot.lane.b32.xlu0 %v784, 96
        %v786 = vpop.permute.xlu0 %785
        %vm787 = vcmask 130048
        %v789 = vsel %vm787, %v772, 0
        %v792 = vsel %vm787, %v786, 0
        %794 = vmatpush.bf16.xpose.msra.mxu0 0
        %795 = vmatpush.bf16.xpose.msra.mxu0 0
        %796 = vmatpush.bf16.xpose.msra.mxu0 0
        %797 = vmatpush.bf16.xpose.msra.mxu0 0
        %798 = vmatpush.bf16.xpose.msra.mxu0 0
        %799 = vmatpush.bf16.xpose.msra.mxu0 0
        %800 = vmatpush.bf16.xpose.msra.mxu0 0
        %801 = vmatpush.bf16.xpose.msra.mxu0 %v792
        %802 = vmatmul.bf16.gmra.mxu0 %v789
        %v803 = vpop.f32.mrf.mxu0
        %v804 = vadd.f32 %v778, %v803
        %v805 = vpop.f32.mrf.mxu0
        %806 = vdwg.mxu0
        %v808 = vunpack.c.l.b16 %v773
        %v809 = vpack.c.b16 %v808, %v808
        %810 = vrot.lane.b32.xlu0 %v809, 96
        %v811 = vpop.permute.xlu0 %810
        %v813 = vsel %vm787, %v773, 0
        %v816 = vsel %vm787, %v811, 0
        %818 = vmatpush.bf16.xpose.msra.mxu0 0
        %819 = vmatpush.bf16.xpose.msra.mxu0 0
        %820 = vmatpush.bf16.xpose.msra.mxu0 0
        %821 = vmatpush.bf16.xpose.msra.mxu0 0
        %822 = vmatpush.bf16.xpose.msra.mxu0 0
        %823 = vmatpush.bf16.xpose.msra.mxu0 0
        %824 = vmatpush.bf16.xpose.msra.mxu0 0
        %825 = vmatpush.bf16.xpose.msra.mxu0 %v816
        %826 = vmatmul.bf16.gmra.mxu0 %v813
        %v827 = vpop.f32.mrf.mxu0
        %v828 = vadd.f32 %v779, %v827
        %v829 = vpop.f32.mrf.mxu0
        %830 = vdwg.mxu0
        %v832 = vunpack.c.l.b16 %v774
        %v833 = vpack.c.b16 %v832, %v832
        %834 = vrot.lane.b32.xlu0 %v833, 96
        %v835 = vpop.permute.xlu0 %834
        %v837 = vsel %vm787, %v774, 0
        %v840 = vsel %vm787, %v835, 0
        %842 = vmatpush.bf16.xpose.msra.mxu0 0
        %843 = vmatpush.bf16.xpose.msra.mxu0 0
        %844 = vmatpush.bf16.xpose.msra.mxu0 0
        %845 = vmatpush.bf16.xpose.msra.mxu0 0
        %846 = vmatpush.bf16.xpose.msra.mxu0 0
        %847 = vmatpush.bf16.xpose.msra.mxu0 0
        %848 = vmatpush.bf16.xpose.msra.mxu0 0
        %849 = vmatpush.bf16.xpose.msra.mxu0 %v840
        %850 = vmatmul.bf16.gmra.mxu0 %v837
        %v851 = vpop.f32.mrf.mxu0
        %v852 = vadd.f32 %v778, %v851
        %v853 = vpop.f32.mrf.mxu0
        %854 = vdwg.mxu0
        %v856 = vunpack.c.l.b16 %v775
        %v857 = vpack.c.b16 %v856, %v856
        %858 = vrot.lane.b32.xlu0 %v857, 96
        %v859 = vpop.permute.xlu0 %858
        %v861 = vsel %vm787, %v775, 0
        %v864 = vsel %vm787, %v859, 0
        %866 = vmatpush.bf16.xpose.msra.mxu0 0
        %867 = vmatpush.bf16.xpose.msra.mxu0 0
        %868 = vmatpush.bf16.xpose.msra.mxu0 0
        %869 = vmatpush.bf16.xpose.msra.mxu0 0
        %870 = vmatpush.bf16.xpose.msra.mxu0 0
        %871 = vmatpush.bf16.xpose.msra.mxu0 0
        %872 = vmatpush.bf16.xpose.msra.mxu0 0
        %873 = vmatpush.bf16.xpose.msra.mxu0 %v864
        %874 = vmatmul.bf16.gmra.mxu0 %v861
        %v875 = vpop.f32.mrf.mxu0
        %v876 = vadd.f32 %v779, %v875
        %v877 = vpop.f32.mrf.mxu0
        %878 = vdwg.mxu0
        %vm879 = vcmask 64512
        %v880 = vsel %vm879, %v804, -inf
        %881 = vmax.xlane.f32.xlu0 %v880
        %v882 = vpop.xlane.xlu0 %881
        %v883 = vsel %vm879, %v828, -inf
        %884 = vmax.xlane.f32.xlu0 %v883
        %v885 = vpop.xlane.xlu0 %884
        %v886 = vsel %vm879, %v852, -inf
        %887 = vmax.xlane.f32.xlu0 %v886
        %v888 = vpop.xlane.xlu0 %887
        %v889 = vsel %vm879, %v876, -inf
        %890 = vmax.xlane.f32.xlu0 %v889
        %v891 = vpop.xlane.xlu0 %890
        %v892 = vsub.f32 %v804, %v882
        %v893 = vsub.f32 %v828, %v885
        %v894 = vsub.f32 %v852, %v888
        %v895 = vsub.f32 %v876, %v891
        %v896 = vmul.f32 %v892, 1.442695
        %v897 = vpow.pop %v896
        %v898 = vmul.f32 %v893, 1.442695
        %v899 = vpow.pop %v898
        %v900 = vmul.f32 %v894, 1.442695
        %v901 = vpow.pop %v900
        %v902 = vmul.f32 %v895, 1.442695
        %v903 = vpow.pop %v902
        %v904 = vsel %vm879, %v897, 0.0
        %905 = vadd.xlane.f32.xlu0 %v904
        %v906 = vpop.xlane.xlu0 %905
        %v907 = vsel %vm879, %v899, 0.0
        %908 = vadd.xlane.f32.xlu0 %v907
        %v909 = vpop.xlane.xlu0 %908
        %v910 = vsel %vm879, %v901, 0.0
        %911 = vadd.xlane.f32.xlu0 %v910
        %v912 = vpop.xlane.xlu0 %911
        %v913 = vsel %vm879, %v903, 0.0
        %914 = vadd.xlane.f32.xlu0 %v913
        %v915 = vpop.xlane.xlu0 %914
        %v916 = vrcp.pop %v906
        %v917 = vrcp.pop %v909
        %v918 = vrcp.pop %v912
        %v919 = vrcp.pop %v915
        %v920 = vmul.f32 %v897, %v916
        %v921 = vmul.f32 %v899, %v917
        %v922 = vmul.f32 %v901, %v918
        %v923 = vmul.f32 %v903, %v919
        %v924 = vpack.c.bf16 %v920, %v920
        %v925 = vpack.c.bf16 %v921, %v921
        %v926 = vpack.c.bf16 %v922, %v922
        %v927 = vpack.c.bf16 %v923, %v923
        %928 = vrot.lane.b32.xlu0 %v784, 64
        %v929 = vpop.permute.xlu0 %928
        %v931 = vsel %vm879, %v924, 0
        %vm933 = vcmask 1043456
        %v935 = vsel %vm933, %v929, 0
        %937 = vmatpush.bf16.msra.mxu0 0
        %938 = vmatpush.bf16.msra.mxu0 0
        %939 = vmatpush.bf16.msra.mxu0 0
        %940 = vmatpush.bf16.msra.mxu0 0
        %941 = vmatpush.bf16.msra.mxu0 0
        %942 = vmatpush.bf16.msra.mxu0 0
        %943 = vmatpush.bf16.msra.mxu0 0
        %944 = vmatpush.bf16.msra.mxu0 %v935
        %945 = vmatmul.bf16.gmra.mxu0 %v931
        %v946 = vpop.f32.mrf.mxu0
        %v947 = vadd.f32 0.0, %v946
        %v948 = vpop.f32.mrf.mxu0
        %949 = vdwg.mxu0
        %950 = vrot.lane.b32.xlu0 %v809, 64
        %v951 = vpop.permute.xlu0 %950
        %v953 = vsel %vm879, %v925, 0
        %v956 = vsel %vm933, %v951, 0
        %958 = vmatpush.bf16.msra.mxu0 0
        %959 = vmatpush.bf16.msra.mxu0 0
        %960 = vmatpush.bf16.msra.mxu0 0
        %961 = vmatpush.bf16.msra.mxu0 0
        %962 = vmatpush.bf16.msra.mxu0 0
        %963 = vmatpush.bf16.msra.mxu0 0
        %964 = vmatpush.bf16.msra.mxu0 0
        %965 = vmatpush.bf16.msra.mxu0 %v956
        %966 = vmatmul.bf16.gmra.mxu0 %v953
        %v967 = vpop.f32.mrf.mxu0
        %v968 = vadd.f32 0.0, %v967
        %v969 = vpop.f32.mrf.mxu0
        %970 = vdwg.mxu0
        %971 = vrot.lane.b32.xlu0 %v833, 64
        %v972 = vpop.permute.xlu0 %971
        %v974 = vsel %vm879, %v926, 0
        %v977 = vsel %vm933, %v972, 0
        %979 = vmatpush.bf16.msra.mxu0 0
        %980 = vmatpush.bf16.msra.mxu0 0
        %981 = vmatpush.bf16.msra.mxu0 0
        %982 = vmatpush.bf16.msra.mxu0 0
        %983 = vmatpush.bf16.msra.mxu0 0
        %984 = vmatpush.bf16.msra.mxu0 0
        %985 = vmatpush.bf16.msra.mxu0 0
        %986 = vmatpush.bf16.msra.mxu0 %v977
        %987 = vmatmul.bf16.gmra.mxu0 %v974
        %v988 = vpop.f32.mrf.mxu0
        %v989 = vadd.f32 0.0, %v988
        %v990 = vpop.f32.mrf.mxu0
        %991 = vdwg.mxu0
        %992 = vrot.lane.b32.xlu0 %v857, 64
        %v993 = vpop.permute.xlu0 %992
        %v995 = vsel %vm879, %v927, 0
        %v998 = vsel %vm933, %v993, 0
        %1000 = vmatpush.bf16.msra.mxu0 0
        %1001 = vmatpush.bf16.msra.mxu0 0
        %1002 = vmatpush.bf16.msra.mxu0 0
        %1003 = vmatpush.bf16.msra.mxu0 0
        %1004 = vmatpush.bf16.msra.mxu0 0
        %1005 = vmatpush.bf16.msra.mxu0 0
        %1006 = vmatpush.bf16.msra.mxu0 0
        %1007 = vmatpush.bf16.msra.mxu0 %v998
        %1008 = vmatmul.bf16.gmra.mxu0 %v995
        %v1009 = vpop.f32.mrf.mxu0
        %v1010 = vadd.f32 0.0, %v1009
        %v1011 = vpop.f32.mrf.mxu0
        %1012 = vdwg.mxu0
        %1015 = vrot.lane.b32.xlu0 %v989, 16
        %v1016 = vpop.permute.xlu0 %1015
        %1017 = vrot.lane.b32.xlu0 %v1010, 16
        %v1018 = vpop.permute.xlu0 %1017
        %v1021 = vsel %vm787, %v947, %v1016
        %v1022 = vsel %vm787, %v968, %v1018
        %v1023 = vpack.c.bf16 %v1022, %v1021
        %v1024 = vperm.slane %v729, 4
        %v1029 = vunpack.c.l.b16 %v712
        %v1030 = vunpack.c.l.b16 %v713
        %v1031 = vunpack.c.l.b16 %v714
        %v1032 = vunpack.c.l.b16 %v715
        %v1033 = vpack.c.b16 %v1030, %v1029
        %v1034 = vpack.c.b16 %v1032, %v1031
        %v1038 = vsel %vm746, %v1023, 0
        %1040 = vmatpush.bf16.msra.mxu0 0
        %1041 = vmatpush.bf16.msra.mxu0 0
        %1042 = vmatpush.bf16.msra.mxu0 0
        %1043 = vmatpush.bf16.msra.mxu0 0
        %1044 = vmatpush.bf16.msra.mxu0 0
        %1045 = vmatpush.bf16.msra.mxu0 0
        %1046 = vmatpush.bf16.msra.mxu0 %v1034
        %1047 = vmatpush.bf16.msra.mxu0 %v1033
        %1048 = vmatmul.bf16.gmra.mxu0 %v1038
        %v1049 = vpop.f32.mrf.mxu0
        %v1050 = vadd.f32 %v1024, %v1049
        %v1051 = vpop.f32.mrf.mxu0
        %v1052 = vadd.f32 %v1024, %v1051
        %1053 = vdwg.mxu0
        %v1054 = vadd.f32 %v699, %v1050
        %v1055 = vadd.f32 %v700, %v1052
        %v1056 = vsel %vm746, %v1054, 0.0
        %1057 = vadd.xlane.f32.xlu0 %v1056
        %v1058 = vpop.xlane.xlu0 %1057
        %v1059 = vsel %vm746, %v1055, 0.0
        %1060 = vadd.xlane.f32.xlu0 %v1059
        %v1061 = vpop.xlane.xlu0 %1060
        %v1062 = vrcp.pop 32.0
        %v1063 = vmul.f32 32.0, %v1062
        %v1064 = vsub.f32 1.0, %v1063
        %v1065 = vmul.f32 %v1062, %v1064
        %v1066 = vadd.f32 %v1062, %v1065
        %vm1067 = vweird.f32 %v1062
        %v1068 = vsel %vm1067, %v1062, %v1066
        %v1069 = vmul.f32 %v1058, %v1068
        %v1070 = vmul.f32 %v1061, %v1068
        %v1071 = vsub.f32 %v1054, %v1069
        %v1072 = vsub.f32 %v1055, %v1070
        %v1073 = vmul.f32 %v1071, %v1071
        %v1074 = vmul.f32 %v1072, %v1072
        %v1075 = vsel %vm746, %v1073, 0.0
        %1076 = vadd.xlane.f32.xlu0 %v1075
        %v1077 = vpop.xlane.xlu0 %1076
        %v1078 = vsel %vm746, %v1074, 0.0
        %1079 = vadd.xlane.f32.xlu0 %v1078
        %v1080 = vpop.xlane.xlu0 %1079
        %v1081 = vmul.f32 %v1077, %v1068
        %v1082 = vmul.f32 %v1080, %v1068
        %v1083 = vadd.f32 %v1081, 1e-12
        %v1084 = vadd.f32 %v1082, 1e-12
        %v1085 = vrsqrt.pop %v1083
        %v1086 = vmul.f32 %v1085, %v1083
        %v1087 = vmul.f32 %v1086, %v1085
        %v1088 = vmul.f32 0.5, %v1087
        %v1089 = vsub.f32 1.5, %v1088
        %v1090 = vmul.f32 %v1085, %v1089
        %vm1091 = vweird.f32 %v1083
        %vm1092 = vweird.f32 %v1085
        %vm1093 = vmor %vm1091, %vm1092
        %v1094 = vsel %vm1093, %v1085, %v1090
        %v1095 = vrsqrt.pop %v1084
        %v1096 = vmul.f32 %v1095, %v1084
        %v1097 = vmul.f32 %v1096, %v1095
        %v1098 = vmul.f32 0.5, %v1097
        %v1099 = vsub.f32 1.5, %v1098
        %v1100 = vmul.f32 %v1095, %v1099
        %vm1101 = vweird.f32 %v1084
        %vm1102 = vweird.f32 %v1095
        %vm1103 = vmor %vm1101, %vm1102
        %v1104 = vsel %vm1103, %v1095, %v1100
        %v1105 = vmul.f32 %v1071, %v1094
        %v1106 = vmul.f32 %v1072, %v1104
        %v1107 = vperm.slane %v729, 0
        %v1108 = vmul.f32 %v1105, %v1107
        %v1109 = vmul.f32 %v1106, %v1107
        %v1110 = vperm.slane %v729, 1
        %v1111 = vadd.f32 %v1108, %v1110
        %v1112 = vadd.f32 %v1109, %v1110
        %v1113 = vpack.c.bf16 %v1112, %v1111
        %v1115 = vperm.slane %v720, 0
        %v1121 = vunpack.c.l.b16 %v716
        %v1122 = vunpack.c.l.b16 %v717
        %v1123 = vunpack.c.l.b16 %v718
        %v1124 = vunpack.c.l.b16 %v719
        %v1125 = vpack.c.b16 %v1122, %v1121
        %v1126 = vpack.c.b16 %v1124, %v1123
        %v1130 = vsel %vm746, %v1113, 0
        %1132 = vmatpush.bf16.msra.mxu0 0
        %1133 = vmatpush.bf16.msra.mxu0 0
        %1134 = vmatpush.bf16.msra.mxu0 0
        %1135 = vmatpush.bf16.msra.mxu0 0
        %1136 = vmatpush.bf16.msra.mxu0 0
        %1137 = vmatpush.bf16.msra.mxu0 0
        %1138 = vmatpush.bf16.msra.mxu0 %v1126
        %1139 = vmatpush.bf16.msra.mxu0 %v1125
        %1140 = vmatmul.bf16.gmra.mxu0 %v1130
        %v1141 = vpop.f32.mrf.mxu0
        %v1142 = vadd.f32 %v1115, %v1141
        %v1143 = vpop.f32.mrf.mxu0
        %v1144 = vadd.f32 %v1115, %v1143
        %1145 = vdwg.mxu0
        %v1146 = vmul.f32 %v1142, 0.5
        %v1147 = vmul.f32 %v1144, 0.5
        %v1148 = vmul.f32 %v1142, 0.044715
        %v1149 = vmul.f32 %v1144, 0.044715
        %v1150 = vmul.f32 %v1148, %v1142
        %v1151 = vmul.f32 %v1149, %v1144
        %v1152 = vmul.f32 %v1150, %v1142
        %v1153 = vmul.f32 %v1151, %v1144
        %v1154 = vadd.f32 %v1142, %v1152
        %v1155 = vadd.f32 %v1144, %v1153
        %v1156 = vmul.f32 %v1154, 0.7978846
        %v1157 = vmul.f32 %v1155, 0.7978846
        %v1158 = vtanh.pop %v1156
        %v1159 = vtanh.pop %v1157
        %v1160 = vadd.f32 %v1158, 1.0
        %v1161 = vadd.f32 %v1159, 1.0
        %v1162 = vmul.f32 %v1146, %v1160
        %v1163 = vmul.f32 %v1147, %v1161
        %v1164 = vpack.c.bf16 %v1163, %v1162
        %v1165 = vperm.slane %v729, 5
        %v1174 = vunpack.c.l.b16 %v721
        %v1175 = vunpack.c.l.b16 %v722
        %v1176 = vunpack.c.l.b16 %v723
        %v1177 = vunpack.c.l.b16 %v724
        %v1178 = vunpack.c.l.b16 %v725
        %v1179 = vunpack.c.l.b16 %v726
        %v1180 = vunpack.c.l.b16 %v727
        %v1181 = vunpack.c.l.b16 %v728
        %v1182 = vpack.c.b16 %v1175, %v1174
        %v1183 = vpack.c.b16 %v1177, %v1176
        %v1184 = vpack.c.b16 %v1179, %v1178
        %v1185 = vpack.c.b16 %v1181, %v1180
        %vm1190 = vcmask 523264
        %v1192 = vsel %vm1190, %v1164, 0
        %1194 = vmatpush.bf16.msra.mxu0 0
        %1195 = vmatpush.bf16.msra.mxu0 0
        %1196 = vmatpush.bf16.msra.mxu0 0
        %1197 = vmatpush.bf16.msra.mxu0 0
        %1198 = vmatpush.bf16.msra.mxu0 %v1185
        %1199 = vmatpush.bf16.msra.mxu0 %v1184
        %1200 = vmatpush.bf16.msra.mxu0 %v1183
        %1201 = vmatpush.bf16.msra.mxu0 %v1182
        %1202 = vmatmul.bf16.gmra.mxu0 %v1192
        %v1203 = vpop.f32.mrf.mxu0
        %v1204 = vadd.f32 %v1165, %v1203
        %v1205 = vpop.f32.mrf.mxu0
        %v1206 = vadd.f32 %v1165, %v1205
        %1207 = vdwg.mxu0
        %v1208 = vadd.f32 %v1111, %v1204
        %v1209 = vadd.f32 %v1112, %v1206
        %v1210 = vsel %vm746, %v1208, 0.0
        %1211 = vadd.xlane.f32.xlu0 %v1210
        %v1212 = vpop.xlane.xlu0 %1211
        %v1213 = vsel %vm746, %v1209, 0.0
        %1214 = vadd.xlane.f32.xlu0 %v1213
        %v1215 = vpop.xlane.xlu0 %1214
        %v1216 = vmul.f32 %v1212, %v1068
        %v1217 = vmul.f32 %v1215, %v1068
        %v1218 = vsub.f32 %v1208, %v1216
        %v1219 = vsub.f32 %v1209, %v1217
        %v1220 = vmul.f32 %v1218, %v1218
        %v1221 = vmul.f32 %v1219, %v1219
        %v1222 = vsel %vm746, %v1220, 0.0
        %1223 = vadd.xlane.f32.xlu0 %v1222
        %v1224 = vpop.xlane.xlu0 %1223
        %v1225 = vsel %vm746, %v1221, 0.0
        %1226 = vadd.xlane.f32.xlu0 %v1225
        %v1227 = vpop.xlane.xlu0 %1226
        %v1228 = vmul.f32 %v1224, %v1068
        %v1229 = vmul.f32 %v1227, %v1068
        %v1230 = vadd.f32 %v1228, 1e-12
        %v1231 = vadd.f32 %v1229, 1e-12
        %v1232 = vrsqrt.pop %v1230
        %v1233 = vmul.f32 %v1232, %v1230
        %v1234 = vmul.f32 %v1233, %v1232
        %v1235 = vmul.f32 0.5, %v1234
        %v1236 = vsub.f32 1.5, %v1235
        %v1237 = vmul.f32 %v1232, %v1236
        %vm1238 = vweird.f32 %v1230
        %vm1239 = vweird.f32 %v1232
        %vm1240 = vmor %vm1238, %vm1239
        %v1241 = vsel %vm1240, %v1232, %v1237
        %v1242 = vrsqrt.pop %v1231
        %v1243 = vmul.f32 %v1242, %v1231
        %v1244 = vmul.f32 %v1243, %v1242
        %v1245 = vmul.f32 0.5, %v1244
        %v1246 = vsub.f32 1.5, %v1245
        %v1247 = vmul.f32 %v1242, %v1246
        %vm1248 = vweird.f32 %v1231
        %vm1249 = vweird.f32 %v1242
        %vm1250 = vmor %vm1248, %vm1249
        %v1251 = vsel %vm1250, %v1242, %v1247
        %v1252 = vmul.f32 %v1218, %v1241
        %v1253 = vmul.f32 %v1219, %v1251
        %v1254 = vperm.slane %v729, 2
        %v1255 = vmul.f32 %v1252, %v1254
        %v1256 = vmul.f32 %v1253, %v1254
        %v1257 = vperm.slane %v729, 3
        %v1258 = vadd.f32 %v1255, %v1257
        %v1259 = vadd.f32 %v1256, %v1257
        %1260 = vst.msk [vmem:[#allocation2] sm:$0xff] %vm746, %v1258
        %1261 = vst.msk [vmem:[#allocation2 + $0x8] sm:$0xff] %vm746, %v1259
        %p1262 = scmp.eq.s32.totalorder %s34, 1
        // Predicated region
        $region109: #{tpu_custom_call.1} parent=75 // pred_check
          %p1263 = pneg %p1262
        $region110: #{tpu_custom_call.1} parent=75 // pred_check_branch
          %1265 = sbr.rel (%p1263) target = $region112
        $region111: #{tpu_custom_call.1} parent=75 // pred_region
          %v1266 = vsel %vm746, %v1258, 0.0
          %1267 = vadd.xlane.f32.xlu0 %v1266
          %v1268 = vpop.xlane.xlu0 %1267
          %v1269 = vsel %vm746, %v1259, 0.0
          %1270 = vadd.xlane.f32.xlu0 %v1269
          %v1271 = vpop.xlane.xlu0 %1270
          %v1272 = vrot.slane %v1268, 4
          %v1273 = vadd.f32 %v1268, %v1272
          %v1274 = vrot.slane %v1273, 2
          %v1275 = vadd.f32 %v1273, %v1274
          %v1276 = vrot.slane %v1275, 1
          %v1277 = vadd.f32 %v1275, %v1276
          %v1278 = vrot.slane %v1271, 4
          %v1279 = vadd.f32 %v1271, %v1278
          %v1280 = vrot.slane %v1279, 2
          %v1281 = vadd.f32 %v1279, %v1280
          %v1282 = vrot.slane %v1281, 1
          %v1283 = vadd.f32 %v1281, %v1282
          %v1284 = vmul.f32 %v1277, 0.00390625
          %v1285 = vmul.f32 %v1283, 0.00390625
          %v1286 = vsub.f32 %v1258, %v1284
          %v1287 = vsub.f32 %v1259, %v1285
          %v1288 = vmul.f32 %v1286, %v1286
          %v1289 = vmul.f32 %v1287, %v1287
          %v1290 = vsel %vm746, %v1288, 0.0
          %1291 = vadd.xlane.f32.xlu0 %v1290
          %v1292 = vpop.xlane.xlu0 %1291
          %v1293 = vsel %vm746, %v1289, 0.0
          %1294 = vadd.xlane.f32.xlu0 %v1293
          %v1295 = vpop.xlane.xlu0 %1294
          %v1296 = vrot.slane %v1292, 4
          %v1297 = vadd.f32 %v1292, %v1296
          %v1298 = vrot.slane %v1297, 2
          %v1299 = vadd.f32 %v1297, %v1298
          %v1300 = vrot.slane %v1299, 1
          %v1301 = vadd.f32 %v1299, %v1300
          %v1302 = vrot.slane %v1295, 4
          %v1303 = vadd.f32 %v1295, %v1302
          %v1304 = vrot.slane %v1303, 2
          %v1305 = vadd.f32 %v1303, %v1304
          %v1306 = vrot.slane %v1305, 1
          %v1307 = vadd.f32 %v1305, %v1306
          %v1308 = vmul.f32 %v1301, 0.00390625
          %v1309 = vmul.f32 %v1307, 0.00390625
          %v1310 = vadd.f32 %v1308, 1e-05
          %v1311 = vadd.f32 %v1309, 1e-05
          %v1312 = vrsqrt.pop %v1310
          %v1313 = vmul.f32 %v1312, %v1310
          %v1314 = vmul.f32 %v1313, %v1312
          %v1315 = vmul.f32 0.5, %v1314
          %v1316 = vsub.f32 1.5, %v1315
          %v1317 = vmul.f32 %v1312, %v1316
          %vm1318 = vweird.f32 %v1310
          %vm1319 = vweird.f32 %v1312
          %vm1320 = vmor %vm1318, %vm1319
          %v1321 = vsel %vm1320, %v1312, %v1317
          %v1322 = vrsqrt.pop %v1311
          %v1323 = vmul.f32 %v1322, %v1311
          %v1324 = vmul.f32 %v1323, %v1322
          %v1325 = vmul.f32 0.5, %v1324
          %v1326 = vsub.f32 1.5, %v1325
          %v1327 = vmul.f32 %v1322, %v1326
          %vm1328 = vweird.f32 %v1311
          %vm1329 = vweird.f32 %v1322
          %vm1330 = vmor %vm1328, %vm1329
          %v1331 = vsel %vm1330, %v1322, %v1327
          %v1332 = vmul.f32 %v1286, %v1321
          %v1333 = vmul.f32 %v1287, %v1331
          %v1334 = vld [vmem:[#allocation12] sm:$0xff]
          %v1335 = vmul.f32 %v1332, %v1334
          %v1336 = vmul.f32 %v1333, %v1334
          %s1337 = scalar_lea.vmem [#allocation12], 8
          %v1338 = vld [vmem:[%s1337] sm:$0xff]
          %v1339 = vadd.f32 %v1335, %v1338
          %v1340 = vadd.f32 %v1336, %v1338
          %v1341 = vpack.c.bf16 %v1340, %v1339
          %v1342 = vld [vmem:[#allocation14] sm:$0xf]
          %v1343 = vld [vmem:[#allocation14 + $0x4] sm:$0xf]
          %v1344 = vld [vmem:[#allocation14 + $0x8] sm:$0xf]
          %v1345 = vld [vmem:[#allocation14 + $0xc] sm:$0xf]
          %v1346 = vld [vmem:[%s11] sm:$0x1]
          %v1348 = vperm.slane %v1346, 0
          %v1354 = vunpack.c.l.b16 %v1342
          %v1355 = vunpack.c.l.b16 %v1343
          %v1356 = vunpack.c.l.b16 %v1344
          %v1357 = vunpack.c.l.b16 %v1345
          %v1358 = vpack.c.b16 %v1355, %v1354
          %v1359 = vpack.c.b16 %v1357, %v1356
          %v1363 = vsel %vm746, %v1341, 0
          %1365 = vmatpush.bf16.msra.mxu0 0
          %1366 = vmatpush.bf16.msra.mxu0 0
          %1367 = vmatpush.bf16.msra.mxu0 0
          %1368 = vmatpush.bf16.msra.mxu0 0
          %1369 = vmatpush.bf16.msra.mxu0 0
          %1370 = vmatpush.bf16.msra.mxu0 0
          %1371 = vmatpush.bf16.msra.mxu0 %v1359
          %1372 = vmatpush.bf16.msra.mxu0 %v1358
          %1373 = vmatmul.bf16.gmra.mxu0 %v1363
          %v1374 = vpop.f32.mrf.mxu0
          %v1375 = vadd.f32 %v1348, %v1374
          %v1376 = vpop.f32.mrf.mxu0
          %v1377 = vadd.f32 %v1348, %v1376
          %1378 = vdwg.mxu0
          %v1379 = vmax.f32 %v1375, 0.0
          %v1380 = vmax.f32 %v1377, 0.0
          %v1381 = vpack.c.bf16 %v1380, %v1379
          %v1382 = vld [vmem:[%s12] sm:$0xf]
          %v1383 = vld [vmem:[%s12 + $0x4] sm:$0xf]
          %v1384 = vld [vmem:[%s12 + $0x8] sm:$0xf]
          %v1385 = vld [vmem:[%s12 + $0xc] sm:$0xf]
          %v1386 = vld [vmem:[%s12 + $0x10] sm:$0xf]
          %v1387 = vld [vmem:[%s12 + $0x14] sm:$0xf]
          %v1388 = vld [vmem:[%s12 + $0x18] sm:$0xf]
          %v1389 = vld [vmem:[%s12 + $0x1c] sm:$0xf]
          %v1390 = vld [vmem:[%s12 + $0x20] sm:$0xf]
          %v1391 = vld [vmem:[%s12 + $0x24] sm:$0xf]
          %v1392 = vld [vmem:[%s12 + $0x28] sm:$0xf]
          %v1393 = vld [vmem:[%s12 + $0x2c] sm:$0xf]
          %v1394 = vld [vmem:[%s12 + $0x30] sm:$0xf]
          %v1395 = vld [vmem:[%s12 + $0x34] sm:$0xf]
          %v1396 = vld [vmem:[%s12 + $0x38] sm:$0xf]
          %v1397 = vld [vmem:[%s12 + $0x3c] sm:$0xf]
          %v1398 = vld [vmem:[%s13] sm:$0x1]
          %v1400 = vperm.slane %v1398, 0
          %v1418 = vunpack.c.l.b16 %v1382
          %v1419 = vunpack.c.l.b16 %v1383
          %v1420 = vunpack.c.l.b16 %v1384
          %v1421 = vunpack.c.l.b16 %v1385
          %v1422 = vunpack.c.l.b16 %v1386
          %v1423 = vunpack.c.l.b16 %v1387
          %v1424 = vunpack.c.l.b16 %v1388
          %v1425 = vunpack.c.l.b16 %v1389
          %v1426 = vunpack.c.l.b16 %v1390
          %v1427 = vunpack.c.l.b16 %v1391
          %v1428 = vunpack.c.l.b16 %v1392
          %v1429 = vunpack.c.l.b16 %v1393
          %v1430 = vunpack.c.l.b16 %v1394
          %v1431 = vunpack.c.l.b16 %v1395
          %v1432 = vunpack.c.l.b16 %v1396
          %v1433 = vunpack.c.l.b16 %v1397
          %v1434 = vpack.c.b16 %v1419, %v1418
          %v1435 = vpack.c.b16 %v1421, %v1420
          %v1436 = vpack.c.b16 %v1423, %v1422
          %v1437 = vpack.c.b16 %v1425, %v1424
          %v1438 = vpack.c.b16 %v1427, %v1426
          %v1439 = vpack.c.b16 %v1429, %v1428
          %v1440 = vpack.c.b16 %v1431, %v1430
          %v1441 = vpack.c.b16 %v1433, %v1432
          %1450 = vmatpush.bf16.msra.mxu0 %v1441
          %1451 = vmatpush.bf16.msra.mxu0 %v1440
          %1452 = vmatpush.bf16.msra.mxu0 %v1439
          %1453 = vmatpush.bf16.msra.mxu0 %v1438
          %1454 = vmatpush.bf16.msra.mxu0 %v1437
          %1455 = vmatpush.bf16.msra.mxu0 %v1436
          %1456 = vmatpush.bf16.msra.mxu0 %v1435
          %1457 = vmatpush.bf16.msra.mxu0 %v1434
          %1458 = vmatmul.bf16.gmra.mxu0 %v1381
          %v1459 = vpop.f32.mrf.mxu0
          %v1460 = vadd.f32 %v1400, %v1459
          %v1461 = vpop.f32.mrf.mxu0
          %v1462 = vadd.f32 %v1400, %v1461
          %1463 = vdwg.mxu0
          %v1464 = vmax.f32 %v1460, 0.0
          %v1465 = vmax.f32 %v1462, 0.0
          %v1466 = vrot.slane %v1464, 4
          %v1467 = vmax.f32 %v1464, %v1466
          %v1468 = vrot.slane %v1467, 2
          %v1469 = vmax.f32 %v1467, %v1468
          %v1470 = vrot.slane %v1469, 1
          %v1471 = vmax.f32 %v1469, %v1470
          %v1472 = vrot.slane %v1465, 4
          %v1473 = vmax.f32 %v1465, %v1472
          %v1474 = vrot.slane %v1473, 2
          %v1475 = vmax.f32 %v1473, %v1474
          %v1476 = vrot.slane %v1475, 1
          %v1477 = vmax.f32 %v1475, %v1476
          %v1478 = vsub.f32 %v1464, %v1471
          %v1479 = vsub.f32 %v1465, %v1477
          %v1480 = vmul.f32 %v1478, 1.442695
          %v1481 = vpow.pop %v1480
          %v1482 = vmul.f32 %v1479, 1.442695
          %v1483 = vpow.pop %v1482
          %v1484 = vrot.slane %v1481, 4
          %v1485 = vadd.f32 %v1481, %v1484
          %v1486 = vrot.slane %v1485, 2
          %v1487 = vadd.f32 %v1485, %v1486
          %v1488 = vrot.slane %v1487, 1
          %v1489 = vadd.f32 %v1487, %v1488
          %v1490 = vrot.slane %v1483, 4
          %v1491 = vadd.f32 %v1483, %v1490
          %v1492 = vrot.slane %v1491, 2
          %v1493 = vadd.f32 %v1491, %v1492
          %v1494 = vrot.slane %v1493, 1
          %v1495 = vadd.f32 %v1493, %v1494
          %v1496 = vlog2.pop %v1489
          %v1497 = vmul.f32 %v1496, 0.6931472
          %v1498 = vlog2.pop %v1495
          %v1499 = vmul.f32 %v1498, 0.6931472
          %v1500 = vsub.f32 %v1478, %v1497
          %v1501 = vsub.f32 %v1479, %v1499
          %v1502 = vrot.slane %v1500, 4
          %v1503 = vadd.f32 %v1500, %v1502
          %v1504 = vrot.slane %v1503, 2
          %v1505 = vadd.f32 %v1503, %v1504
          %v1506 = vrot.slane %v1505, 1
          %v1507 = vadd.f32 %v1505, %v1506
          %v1508 = vrot.slane %v1501, 4
          %v1509 = vadd.f32 %v1501, %v1508
          %v1510 = vrot.slane %v1509, 2
          %v1511 = vadd.f32 %v1509, %v1510
          %v1512 = vrot.slane %v1511, 1
          %v1513 = vadd.f32 %v1511, %v1512
          %v1514 = vrcp.pop 8.0
          %v1515 = vmul.f32 8.0, %v1514
          %v1516 = vsub.f32 1.0, %v1515
          %v1517 = vmul.f32 %v1514, %v1516
          %v1518 = vadd.f32 %v1514, %v1517
          %vm1519 = vweird.f32 %v1514
          %v1520 = vsel %vm1519, %v1514, %v1518
          %v1521 = vmul.f32 %v1507, %v1520
          %v1522 = vmul.f32 %v1513, %v1520
          %vm1525 = vcmask 1041409
          %v1526 = vsel %vm1525, %v1522, %v1521
          %1528 = vst [vmem:[#allocation15] sm:$0x3] %v1526
        $region112: #{tpu_custom_call.1} parent=75 // pred_fallthru
          _
        // Predicated region
        $region113: #{tpu_custom_call.1} parent=75 // pred_check
          %p1529 = pneg %p376
        $region114: #{tpu_custom_call.1} parent=75 // pred_check_branch
          %1531 = sbr.rel (%p1529) target = $region116
        $region115: #{tpu_custom_call.1} parent=75 // pred_region
          %1533 = vsyncadd [#allocation5], 0
          %s1535 = sshll.u32 [#allocation15], 4
          %s1536 = int_to_ptr.vmem [resolvable:$true] %s1535
          %s1537 = sshll.u32 %s14, 4
          %s1538 = int_to_ptr.hbm [resolvable:$true] %s1537
          %1540 = dma.vmem_to_hbm [thread:$0]  %s1536, 32, %s1538, [#allocation5]
        $region116: #{tpu_custom_call.1} parent=75 // pred_fallthru
          _
        // Predicated region
        $region117: #{tpu_custom_call.1} parent=75 // pred_check
          %p1541 = pneg %p376
        $region118: #{tpu_custom_call.1} parent=75 // pred_check_branch
          %1543 = sbr.rel (%p1541) target = $region120
        $region119: #{tpu_custom_call.1} parent=75 // pred_region
          %1545 = dma.done [#allocation5], 32
        $region120: #{tpu_custom_call.1} parent=75 // pred_fallthru
          _
      $region76: #{tpu_custom_call.1} parent=5 // pred_fallthru
        _
      %p1546 = scmp.le.s32.totalorder 2, %s29
      // Predicated region
      $region121: #{tpu_custom_call.1} parent=5 // pred_check
        %p1547 = pneg %p1546
      $region122: #{tpu_custom_call.1} parent=5 // pred_check_branch
        %1549 = sbr.rel (%p1547) target = $region124
      $region123: #{tpu_custom_call.1} parent=5 // pred_region
        %s1550 = ssub.s32 %s29, 2
      $region124: #{tpu_custom_call.1} parent=5 // pred_fallthru
        _
    $region6: #{tpu_custom_call.1} parent=1 // loop_footer
      %s33 = sadd.s32 1, %s29
    $region7: #{tpu_custom_call.1} parent=1 // loop_footer_branch
      %28 = sbr.rel target = $region3
    $region8: #{tpu_custom_call.1} parent=1 // loop_exit
      _
    %1551 = vsyncpa [#allocation4], 1
    %s1552 = scalar_lea.sflag [#allocation4], 1
    %1553 = vsyncpa %s1552, 1
    %1554 = vsyncpa [#allocation7], 1
    %s1555 = scalar_lea.sflag [#allocation7], 1
    %1556 = vsyncpa %s1555, 1
    %1557 = vsyncpa [#allocation10], 1
    %s1558 = scalar_lea.sflag [#allocation10], 1
    %1559 = vsyncpa %s1558, 1
    %1560 = vsyncpa [#allocation13], 1
    %1561 = vsyncpa [#allocation5], 1
    %s1562 = scalar_lea.sflag [#allocation5], 1
    %1563 = vsyncpa %s1562, 1

</llo_original>
